<compile_context>
chip_gen: v5e
topology: v5e:2x2
jax: 0.10.0
libtpu: 0.0.40
codegen_flags: <defaults>
</compile_context>

<pallas_src>
import functools

import jax
import jax.numpy as jnp
from jax.experimental import pallas as pl
from jax.experimental.pallas import tpu as pltpu


# ----------------------------- Pallas kernel -------------------------------

def _conv_block_kernel(x_ref, w_ref, c_ref, r_ref, o_ref, *,
                       eps, H, W, bt, matmul_dtype):
    """One grid step: `bt` images, fused conv3x3 + GroupNorm + Mish.

    x_ref : (bt, C_in, HW)    input images, flattened spatial (lane) dim
    w_ref : (9, C_out, C_in)  conv weight per tap t = 3*dy + dx (matmul dtype)
    c_ref : (C_out, 3)        packed f32 per-channel constants [bias|gamma|beta]
    r_ref : (C_out, C_out)    group-averaging matrix: 1/(cg*HW) iff same group
    o_ref : (bt, C_out, HW)   output block in the final layout (no post-passes)
    """
    HW = H * W
    C_out = o_ref.shape[1]

    consts = c_ref[...]
    bias, gamma, beta = consts[:, 0:1], consts[:, 1:2], consts[:, 2:3]
    rn = r_ref[...]                                        # (C_out, C_out) f32

    # Horizontal edge masks (vertical taps are handled by the zero padding of
    # the shifted image).  Hoisted out of the per-image loop.
    col = jax.lax.broadcasted_iota(jnp.int32, (1, HW), 1) % W
    left_ok = col >= 1           # destination column has a valid left neighbour
    right_ok = col <= W - 2      # ... a valid right neighbour

    def one_image(b, carry):
        xb = x_ref[b]                                       # (C_in, HW)
        zpad = jnp.zeros((xb.shape[0], W + 1), xb.dtype)
        xbp = jnp.concatenate([zpad, xb, zpad], axis=1)     # (C_in, HW + 2W + 2)

        # --- 3x3 conv: 9 shifted views -> 9 accumulating MXU dots (f32 acc) ---
        acc = None
        for dy in range(3):
            for dx in range(3):
                start = (W + 1) + (dy - 1) * W + (dx - 1)   # static offset
                sh = xbp[:, start:start + HW]               # shifted image view
                if dx == 0:
                    sh = jnp.where(left_ok, sh, jnp.zeros_like(sh))
                elif dx == 2:
                    sh = jnp.where(right_ok, sh, jnp.zeros_like(sh))
                d = jnp.dot(w_ref[dy * 3 + dx], sh.astype(matmul_dtype),
                            preferred_element_type=jnp.float32)
                acc = d if acc is None else acc + d
        acc = acc + bias                                    # (C_out, HW) f32

        # --- GroupNorm, two-pass (mean, then centered variance) ---
        ch_sum = jnp.sum(acc, axis=1, keepdims=True)        # (C_out, 1)
        mean = jnp.dot(rn, ch_sum, preferred_element_type=jnp.float32)
        centered = acc - mean
        ch_ssq = jnp.sum(centered * centered, axis=1, keepdims=True)
        var = jnp.dot(rn, ch_ssq, preferred_element_type=jnp.float32)
        y = centered * (jax.lax.rsqrt(var + eps) * gamma) + beta

        # --- Mish(y) = y * tanh(softplus(y)) = y * u / (u + 2), u = e^y(e^y+2)
        e = jnp.exp(jnp.minimum(y, 20.0))       # clamp: no inf in the dead branch
        u = e * (e + 2.0)
        mish = y * u * pl.reciprocal(u + 2.0, approx=True)
        out = jnp.where(y > 20.0, y, mish)

        o_ref[b] = out.astype(o_ref.dtype)
        return carry

    jax.lax.fori_loop(0, bt, one_image, 0, unroll=bt <= 2)


# ------------------------------- wrapper ------------------------------------

def _vmem_block_bytes(bt, C_in, C_out, HW, in_bytes, out_bytes):
    # double-buffered input/output blocks + live per-image f32 temporaries
    blocks = 2 * bt * HW * (C_in * in_bytes + C_out * out_bytes)
    live = 4 * C_out * HW * 4
    return blocks + live


def _pick_batch_tile(B, C_in, C_out, HW, in_bytes, out_bytes, budget):
    """Largest bt that divides B, fits the VMEM budget, and (when B >= 2)
    leaves at least 2 grid steps so v7x's two TensorCores both get work."""
    best = 1
    for bt in range(1, B + 1):
        if B % bt:
            continue
        if _vmem_block_bytes(bt, C_in, C_out, HW, in_bytes, out_bytes) > budget:
            continue
        if B >= 2 and B // bt < 2:
            continue
        best = bt
    return best


def conv_block_forward(x, w, b, gamma, beta, *, num_groups=16, eps=1e-5,
                       batch_tile=None, matmul_dtype=jnp.bfloat16,
                       out_dtype=jnp.float32):
    """x: (B, C_in, H, W) f32; w: (C_out, C_in, 3, 3); b/gamma/beta: (C_out,)."""
    B, C_in, H, W = x.shape
    C_out = w.shape[0]
    assert C_out % num_groups == 0
    cg = C_out // num_groups
    HW = H * W
    # Stores are lane-dense when HW % 128 == 0 (true for 16x16 here).
    # TODO(synk): pad HW to a multiple of 128 lanes and mask the GN sums when it isn't.

    in_bytes = jnp.dtype(x.dtype).itemsize
    out_bytes = jnp.dtype(out_dtype).itemsize
    try:
        vmem_cap = pltpu.get_tpu_info().vmem_capacity_bytes
    except Exception:
        vmem_cap = 64 * 1024 * 1024            # v7x-safe fallback
    budget = int(0.70 * vmem_cap)

    if batch_tile is None:
        bt = _pick_batch_tile(B, C_in, C_out, HW, in_bytes, out_bytes, budget)
    else:
        bt = batch_tile
        assert B % bt == 0, "batch_tile must divide the batch size"

    w_bytes = jnp.dtype(matmul_dtype).itemsize
    resident = 2 * (9 * C_out * C_in * w_bytes + C_out * C_out * 4 + C_out * 3 * 4)
    vmem_limit = int(min(
        max(_vmem_block_bytes(bt, C_in, C_out, HW, in_bytes, out_bytes)
            + resident + (2 << 20), 16 << 20),
        budget))

    # Zero-copy input layout: no im2col / transpose HBM passes.
    x3 = x.reshape(B, C_in, HW)
    # TODO(synk): also cast x to bf16 here when C_in is large (halves input DMA).
    w9 = jnp.transpose(w, (2, 3, 0, 1)).reshape(9, C_out, C_in).astype(matmul_dtype)
    consts = jnp.stack([b, gamma, beta], axis=1).astype(jnp.float32)   # (C_out, 3)
    gid = jnp.arange(C_out) // cg
    rn = (gid[:, None] == gid[None, :]).astype(jnp.float32) / float(cg * HW)

    kernel = functools.partial(_conv_block_kernel, eps=eps, H=H, W=W, bt=bt,
                               matmul_dtype=matmul_dtype)

    # TODO(synk): at large C_out add a whole-group C_out tile as a second
    # "parallel" grid axis (bounds per-step VMEM, adds megacore parallelism).
    out = pl.pallas_call(
        kernel,
        out_shape=jax.ShapeDtypeStruct((B, C_out, HW), out_dtype),
        grid_spec=pltpu.PrefetchScalarGridSpec(
            num_scalar_prefetch=0,
            grid=(B // bt,),
            in_specs=[
                pl.BlockSpec((bt, C_in, HW), lambda i: (i, 0, 0)),     # images
                pl.BlockSpec((9, C_out, C_in), lambda i: (0, 0, 0)),   # weights (resident)
                pl.BlockSpec((C_out, 3), lambda i: (0, 0)),            # bias/gamma/beta
                pl.BlockSpec((C_out, C_out), lambda i: (0, 0)),        # group-avg matrix
            ],
            out_specs=pl.BlockSpec((bt, C_out, HW), lambda i: (i, 0, 0)),
        ),
        compiler_params=pltpu.CompilerParams(
            dimension_semantics=("parallel",),     # batch tiles -> megacore TCs
            vmem_limit_bytes=vmem_limit,
        ),
    )(x3, w9, consts, rn)

    return out.reshape(B, C_out, H, W)             # free reshape; final NCHW


# --------------------------- pure-JAX reference ------------------------------

def _reference(x, w, b, gamma, beta, *, num_groups=16, eps=1e-5):
    y = jax.lax.conv_general_dilated(
        x, w, window_strides=(1, 1), padding=((1, 1), (1, 1)),
        dimension_numbers=("NCHW", "OIHW", "NCHW"))
    y = y + b.reshape(1, -1, 1, 1)
    B, C, H, W = y.shape
    yg = y.reshape(B, num_groups, -1)
    mean = yg.mean(axis=2, keepdims=True)
    var = yg.var(axis=2, keepdims=True)
    yn = ((yg - mean) / jnp.sqrt(var + eps)).reshape(B, C, H, W)
    yn = yn * gamma.reshape(1, -1, 1, 1) + beta.reshape(1, -1, 1, 1)
    return yn * jnp.tanh(jax.nn.softplus(yn))


# --------------------------------- main --------------------------------------

if __name__ == "__main__":
    B, C_in, C_out, H, W = 2, 4, 32, 16, 16   # GroupNorm(16, C_out) => C_out % 16 == 0

    key = jax.random.PRNGKey(0)
    kx, kw, kb, kg, kbe = jax.random.split(key, 5)
    x = jax.random.normal(kx, (B, C_in, H, W), dtype=jnp.float32)
    w = jax.random.normal(kw, (C_out, C_in, 3, 3), dtype=jnp.float32) * 0.1
    b = jax.random.normal(kb, (C_out,), dtype=jnp.float32) * 0.1
    gamma = 1.0 + 0.1 * jax.random.normal(kg, (C_out,), dtype=jnp.float32)
    beta = 0.1 * jax.random.normal(kbe, (C_out,), dtype=jnp.float32)

    ref = _reference(x, w, b, gamma, beta)

    # f32 matmul path: tight check against the f32 reference.
    out_f32 = jax.block_until_ready(
        conv_block_forward(x, w, b, gamma, beta, matmul_dtype=jnp.float32))
    assert out_f32.shape == (B, C_out, H, W)
    err_f32 = float(jnp.max(jnp.abs(out_f32 - ref)))
    assert jnp.allclose(out_f32, ref, atol=2e-3, rtol=1e-2), err_f32

    # bf16 matmul path (default): tolerance widened only for bf16 conv operands
    # (GroupNorm / Mish stay f32).
    out_bf16 = jax.block_until_ready(conv_block_forward(x, w, b, gamma, beta))
    assert out_bf16.shape == (B, C_out, H, W)
    err_bf16 = float(jnp.max(jnp.abs(out_bf16 - ref)))
    assert jnp.allclose(out_bf16, ref, atol=5e-2, rtol=5e-2), err_bf16

    print("KERNEL_OK")
</pallas_src>

<mosaic_0001>
module attributes {stable_mosaic.version = 11 : i64} {
  func.func @_conv_block_kernel(%arg0: i32, %arg1: memref<1x4x256xf32, #tpu.memory_space<vmem>>, %arg2: memref<9x32x4xf32, #tpu.memory_space<vmem>>, %arg3: memref<32x3xf32, #tpu.memory_space<vmem>>, %arg4: memref<32x32xf32, #tpu.memory_space<vmem>>, %arg5: memref<1x32x256xf32, #tpu.memory_space<vmem>>) attributes {dimension_semantics = [#tpu.dimension_semantics<parallel>], iteration_bounds = array<i64: 2>, scalar_prefetch = 0 : i64, scratch_operands = 0 : i64, tpu.core_type = #tpu.core_type<tc>, window_params = [{transform_indices = @transform_0, window_bounds = array<i64: 1, 4, 256>}, {pipeline_mode = #tpu.pipeline_mode<synchronous>, transform_indices = @transform_1, window_bounds = array<i64: 9, 32, 4>}, {pipeline_mode = #tpu.pipeline_mode<synchronous>, transform_indices = @transform_2, window_bounds = array<i64: 32, 3>}, {pipeline_mode = #tpu.pipeline_mode<synchronous>, transform_indices = @transform_3, window_bounds = array<i64: 32, 32>}, {transform_indices = @transform_4, window_bounds = array<i64: 1, 32, 256>}]} {
    %c0 = arith.constant 0 : index
    %c0_0 = arith.constant 0 : index
    %0 = vector.load %arg3[%c0, %c0_0] : memref<32x3xf32, #tpu.memory_space<vmem>>, vector<32x3xf32>
    %1 = vector.extract_strided_slice %0 {offsets = [0, 0], sizes = [32, 1], strides = [1, 1]} : vector<32x3xf32> to vector<32x1xf32>
    %2 = vector.extract_strided_slice %0 {offsets = [0, 1], sizes = [32, 1], strides = [1, 1]} : vector<32x3xf32> to vector<32x1xf32>
    %3 = vector.extract_strided_slice %0 {offsets = [0, 2], sizes = [32, 1], strides = [1, 1]} : vector<32x3xf32> to vector<32x1xf32>
    %c0_1 = arith.constant 0 : index
    %c0_2 = arith.constant 0 : index
    %4 = vector.load %arg4[%c0_1, %c0_2] : memref<32x32xf32, #tpu.memory_space<vmem>>, vector<32x32xf32>
    %5 = tpu.iota {dimensions = array<i32: 1>} : vector<1x256xi32>
    %c16_i32 = arith.constant 16 : i32
    %c0_i32 = arith.constant 0 : i32
    %6 = arith.cmpi eq, %c16_i32, %c0_i32 : i32
    %c1_i32 = arith.constant 1 : i32
    %7 = arith.select %6, %c1_i32, %c16_i32 : i32
    %8 = vector.broadcast %7 : i32 to vector<1x256xi32>
    %9 = arith.remsi %5, %8 : vector<1x256xi32>
    %c0_i32_3 = arith.constant 0 : i32
    %10 = vector.broadcast %c0_i32_3 : i32 to vector<1x256xi32>
    %11 = arith.cmpi ne, %9, %10 : vector<1x256xi32>
    %c0_i32_4 = arith.constant 0 : i32
    %12 = vector.broadcast %c0_i32_4 : i32 to vector<1x256xi32>
    %13 = arith.cmpi slt, %9, %12 : vector<1x256xi32>
    %c0_i32_5 = arith.constant 0 : i32
    %14 = arith.cmpi slt, %7, %c0_i32_5 : i32
    %15 = vector.broadcast %14 : i1 to vector<1x256xi1>
    %16 = vector.broadcast %15 : vector<1x256xi1> to vector<1x256xi1>
    %17 = arith.xori %13, %16 : vector<1x256xi1>
    %18 = arith.andi %17, %11 : vector<1x256xi1>
    %19 = vector.broadcast %7 : i32 to vector<1x256xi32>
    %20 = arith.addi %9, %19 : vector<1x256xi32>
    %21 = arith.select %18, %20, %9 : vector<1x256xi1>, vector<1x256xi32>
    %c1_i32_6 = arith.constant 1 : i32
    %22 = vector.broadcast %c1_i32_6 : i32 to vector<1x256xi32>
    %23 = arith.cmpi sge, %21, %22 : vector<1x256xi32>
    %c14_i32 = arith.constant 14 : i32
    %24 = vector.broadcast %c14_i32 : i32 to vector<1x256xi32>
    %25 = arith.cmpi sle, %21, %24 : vector<1x256xi32>
    %c0_i32_7 = arith.constant 0 : i32
    %26 = arith.index_cast %c0_i32_7 : i32 to index
    %c0_8 = arith.constant 0 : index
    %c0_9 = arith.constant 0 : index
    %27 = vector.load %arg1[%26, %c0_8, %c0_9] : memref<1x4x256xf32, #tpu.memory_space<vmem>>, vector<1x4x256xf32>
    %28 = vector.shape_cast %27 : vector<1x4x256xf32> to vector<4x256xf32>
    %cst = arith.constant 0.000000e+00 : f32
    %29 = vector.broadcast %cst : f32 to vector<4x17xf32>
    %30 = tpu.concatenate %29, %28, %29 in 1 : vector<4x17xf32>, vector<4x256xf32>, vector<4x17xf32> -> vector<4x290xf32>
    %31 = vector.extract_strided_slice %30 {offsets = [0, 0], sizes = [4, 256], strides = [1, 1]} : vector<4x290xf32> to vector<4x256xf32>
    %cst_10 = arith.constant 0.000000e+00 : f32
    %32 = vector.broadcast %cst_10 : f32 to vector<4x256xf32>
    %33 = vector.shape_cast %23 : vector<1x256xi1> to vector<1x256xi1>
    %34 = vector.broadcast %33 : vector<1x256xi1> to vector<4x256xi1>
    %35 = arith.select %34, %31, %32 : vector<4x256xi1>, vector<4x256xf32>
    %c0_11 = arith.constant 0 : index
    %c0_12 = arith.constant 0 : index
    %c0_13 = arith.constant 0 : index
    %36 = vector.load %arg2[%c0_11, %c0_12, %c0_13] : memref<9x32x4xf32, #tpu.memory_space<vmem>>, vector<1x32x4xf32>
    %37 = vector.shape_cast %36 : vector<1x32x4xf32> to vector<32x4xf32>
    %cst_14 = arith.constant dense<0.000000e+00> : vector<32x256xf32>
    %38 = tpu.matmul %37, %35, %cst_14 {dimension_numbers = #tpu.dot_dimension_numbers<[1], [0], [0], [1], [0, 0, 1, 1], [], []>} : vector<32x4xf32>, vector<4x256xf32>, vector<32x256xf32> -> vector<32x256xf32>
    %39 = vector.extract_strided_slice %30 {offsets = [0, 1], sizes = [4, 256], strides = [1, 1]} : vector<4x290xf32> to vector<4x256xf32>
    %c1 = arith.constant 1 : index
    %c0_15 = arith.constant 0 : index
    %c0_16 = arith.constant 0 : index
    %40 = vector.load %arg2[%c1, %c0_15, %c0_16] : memref<9x32x4xf32, #tpu.memory_space<vmem>>, vector<1x32x4xf32>
    %41 = vector.shape_cast %40 : vector<1x32x4xf32> to vector<32x4xf32>
    %cst_17 = arith.constant dense<0.000000e+00> : vector<32x256xf32>
    %42 = tpu.matmul %41, %39, %cst_17 {dimension_numbers = #tpu.dot_dimension_numbers<[1], [0], [0], [1], [0, 0, 1, 1], [], []>} : vector<32x4xf32>, vector<4x256xf32>, vector<32x256xf32> -> vector<32x256xf32>
    %43 = arith.addf %38, %42 : vector<32x256xf32>
    %44 = vector.extract_strided_slice %30 {offsets = [0, 2], sizes = [4, 256], strides = [1, 1]} : vector<4x290xf32> to vector<4x256xf32>
    %cst_18 = arith.constant 0.000000e+00 : f32
    %45 = vector.broadcast %cst_18 : f32 to vector<4x256xf32>
    %46 = vector.shape_cast %25 : vector<1x256xi1> to vector<1x256xi1>
    %47 = vector.broadcast %46 : vector<1x256xi1> to vector<4x256xi1>
    %48 = arith.select %47, %44, %45 : vector<4x256xi1>, vector<4x256xf32>
    %c2 = arith.constant 2 : index
    %c0_19 = arith.constant 0 : index
    %c0_20 = arith.constant 0 : index
    %49 = vector.load %arg2[%c2, %c0_19, %c0_20] : memref<9x32x4xf32, #tpu.memory_space<vmem>>, vector<1x32x4xf32>
    %50 = vector.shape_cast %49 : vector<1x32x4xf32> to vector<32x4xf32>
    %cst_21 = arith.constant dense<0.000000e+00> : vector<32x256xf32>
    %51 = tpu.matmul %50, %48, %cst_21 {dimension_numbers = #tpu.dot_dimension_numbers<[1], [0], [0], [1], [0, 0, 1, 1], [], []>} : vector<32x4xf32>, vector<4x256xf32>, vector<32x256xf32> -> vector<32x256xf32>
    %52 = arith.addf %43, %51 : vector<32x256xf32>
    %53 = vector.extract_strided_slice %30 {offsets = [0, 16], sizes = [4, 256], strides = [1, 1]} : vector<4x290xf32> to vector<4x256xf32>
    %cst_22 = arith.constant 0.000000e+00 : f32
    %54 = vector.broadcast %cst_22 : f32 to vector<4x256xf32>
    %55 = vector.shape_cast %23 : vector<1x256xi1> to vector<1x256xi1>
    %56 = vector.broadcast %55 : vector<1x256xi1> to vector<4x256xi1>
    %57 = arith.select %56, %53, %54 : vector<4x256xi1>, vector<4x256xf32>
    %c3 = arith.constant 3 : index
    %c0_23 = arith.constant 0 : index
    %c0_24 = arith.constant 0 : index
    %58 = vector.load %arg2[%c3, %c0_23, %c0_24] : memref<9x32x4xf32, #tpu.memory_space<vmem>>, vector<1x32x4xf32>
    %59 = vector.shape_cast %58 : vector<1x32x4xf32> to vector<32x4xf32>
    %cst_25 = arith.constant dense<0.000000e+00> : vector<32x256xf32>
    %60 = tpu.matmul %59, %57, %cst_25 {dimension_numbers = #tpu.dot_dimension_numbers<[1], [0], [0], [1], [0, 0, 1, 1], [], []>} : vector<32x4xf32>, vector<4x256xf32>, vector<32x256xf32> -> vector<32x256xf32>
    %61 = arith.addf %52, %60 : vector<32x256xf32>
    %62 = vector.extract_strided_slice %30 {offsets = [0, 17], sizes = [4, 256], strides = [1, 1]} : vector<4x290xf32> to vector<4x256xf32>
    %c4 = arith.constant 4 : index
    %c0_26 = arith.constant 0 : index
    %c0_27 = arith.constant 0 : index
    %63 = vector.load %arg2[%c4, %c0_26, %c0_27] : memref<9x32x4xf32, #tpu.memory_space<vmem>>, vector<1x32x4xf32>
    %64 = vector.shape_cast %63 : vector<1x32x4xf32> to vector<32x4xf32>
    %cst_28 = arith.constant dense<0.000000e+00> : vector<32x256xf32>
    %65 = tpu.matmul %64, %62, %cst_28 {dimension_numbers = #tpu.dot_dimension_numbers<[1], [0], [0], [1], [0, 0, 1, 1], [], []>} : vector<32x4xf32>, vector<4x256xf32>, vector<32x256xf32> -> vector<32x256xf32>
    %66 = arith.addf %61, %65 : vector<32x256xf32>
    %67 = vector.extract_strided_slice %30 {offsets = [0, 18], sizes = [4, 256], strides = [1, 1]} : vector<4x290xf32> to vector<4x256xf32>
    %cst_29 = arith.constant 0.000000e+00 : f32
    %68 = vector.broadcast %cst_29 : f32 to vector<4x256xf32>
    %69 = vector.shape_cast %25 : vector<1x256xi1> to vector<1x256xi1>
    %70 = vector.broadcast %69 : vector<1x256xi1> to vector<4x256xi1>
    %71 = arith.select %70, %67, %68 : vector<4x256xi1>, vector<4x256xf32>
    %c5 = arith.constant 5 : index
    %c0_30 = arith.constant 0 : index
    %c0_31 = arith.constant 0 : index
    %72 = vector.load %arg2[%c5, %c0_30, %c0_31] : memref<9x32x4xf32, #tpu.memory_space<vmem>>, vector<1x32x4xf32>
    %73 = vector.shape_cast %72 : vector<1x32x4xf32> to vector<32x4xf32>
    %cst_32 = arith.constant dense<0.000000e+00> : vector<32x256xf32>
    %74 = tpu.matmul %73, %71, %cst_32 {dimension_numbers = #tpu.dot_dimension_numbers<[1], [0], [0], [1], [0, 0, 1, 1], [], []>} : vector<32x4xf32>, vector<4x256xf32>, vector<32x256xf32> -> vector<32x256xf32>
    %75 = arith.addf %66, %74 : vector<32x256xf32>
    %76 = vector.extract_strided_slice %30 {offsets = [0, 32], sizes = [4, 256], strides = [1, 1]} : vector<4x290xf32> to vector<4x256xf32>
    %cst_33 = arith.constant 0.000000e+00 : f32
    %77 = vector.broadcast %cst_33 : f32 to vector<4x256xf32>
    %78 = vector.shape_cast %23 : vector<1x256xi1> to vector<1x256xi1>
    %79 = vector.broadcast %78 : vector<1x256xi1> to vector<4x256xi1>
    %80 = arith.select %79, %76, %77 : vector<4x256xi1>, vector<4x256xf32>
    %c6 = arith.constant 6 : index
    %c0_34 = arith.constant 0 : index
    %c0_35 = arith.constant 0 : index
    %81 = vector.load %arg2[%c6, %c0_34, %c0_35] : memref<9x32x4xf32, #tpu.memory_space<vmem>>, vector<1x32x4xf32>
    %82 = vector.shape_cast %81 : vector<1x32x4xf32> to vector<32x4xf32>
    %cst_36 = arith.constant dense<0.000000e+00> : vector<32x256xf32>
    %83 = tpu.matmul %82, %80, %cst_36 {dimension_numbers = #tpu.dot_dimension_numbers<[1], [0], [0], [1], [0, 0, 1, 1], [], []>} : vector<32x4xf32>, vector<4x256xf32>, vector<32x256xf32> -> vector<32x256xf32>
    %84 = arith.addf %75, %83 : vector<32x256xf32>
    %85 = vector.extract_strided_slice %30 {offsets = [0, 33], sizes = [4, 256], strides = [1, 1]} : vector<4x290xf32> to vector<4x256xf32>
    %c7 = arith.constant 7 : index
    %c0_37 = arith.constant 0 : index
    %c0_38 = arith.constant 0 : index
    %86 = vector.load %arg2[%c7, %c0_37, %c0_38] : memref<9x32x4xf32, #tpu.memory_space<vmem>>, vector<1x32x4xf32>
    %87 = vector.shape_cast %86 : vector<1x32x4xf32> to vector<32x4xf32>
    %cst_39 = arith.constant dense<0.000000e+00> : vector<32x256xf32>
    %88 = tpu.matmul %87, %85, %cst_39 {dimension_numbers = #tpu.dot_dimension_numbers<[1], [0], [0], [1], [0, 0, 1, 1], [], []>} : vector<32x4xf32>, vector<4x256xf32>, vector<32x256xf32> -> vector<32x256xf32>
    %89 = arith.addf %84, %88 : vector<32x256xf32>
    %90 = vector.extract_strided_slice %30 {offsets = [0, 34], sizes = [4, 256], strides = [1, 1]} : vector<4x290xf32> to vector<4x256xf32>
    %cst_40 = arith.constant 0.000000e+00 : f32
    %91 = vector.broadcast %cst_40 : f32 to vector<4x256xf32>
    %92 = vector.shape_cast %25 : vector<1x256xi1> to vector<1x256xi1>
    %93 = vector.broadcast %92 : vector<1x256xi1> to vector<4x256xi1>
    %94 = arith.select %93, %90, %91 : vector<4x256xi1>, vector<4x256xf32>
    %c8 = arith.constant 8 : index
    %c0_41 = arith.constant 0 : index
    %c0_42 = arith.constant 0 : index
    %95 = vector.load %arg2[%c8, %c0_41, %c0_42] : memref<9x32x4xf32, #tpu.memory_space<vmem>>, vector<1x32x4xf32>
    %96 = vector.shape_cast %95 : vector<1x32x4xf32> to vector<32x4xf32>
    %cst_43 = arith.constant dense<0.000000e+00> : vector<32x256xf32>
    %97 = tpu.matmul %96, %94, %cst_43 {dimension_numbers = #tpu.dot_dimension_numbers<[1], [0], [0], [1], [0, 0, 1, 1], [], []>} : vector<32x4xf32>, vector<4x256xf32>, vector<32x256xf32> -> vector<32x256xf32>
    %98 = arith.addf %89, %97 : vector<32x256xf32>
    %99 = vector.broadcast %1 : vector<32x1xf32> to vector<32x256xf32>
    %100 = arith.addf %98, %99 : vector<32x256xf32>
    %cst_44 = arith.constant dense<0.000000e+00> : vector<32xf32>
    %101 = vector.multi_reduction <add>, %100, %cst_44 [1] : vector<32x256xf32> to vector<32xf32>
    %102 = vector.shape_cast %101 : vector<32xf32> to vector<32x1xf32>
    %cst_45 = arith.constant dense<0.000000e+00> : vector<32x1xf32>
    %103 = tpu.matmul %4, %102, %cst_45 {dimension_numbers = #tpu.dot_dimension_numbers<[1], [0], [0], [1], [0, 0, 1, 1], [], []>} : vector<32x32xf32>, vector<32x1xf32>, vector<32x1xf32> -> vector<32x1xf32>
    %104 = vector.broadcast %103 : vector<32x1xf32> to vector<32x256xf32>
    %105 = arith.subf %100, %104 : vector<32x256xf32>
    %106 = arith.mulf %105, %105 : vector<32x256xf32>
    %cst_46 = arith.constant dense<0.000000e+00> : vector<32xf32>
    %107 = vector.multi_reduction <add>, %106, %cst_46 [1] : vector<32x256xf32> to vector<32xf32>
    %108 = vector.shape_cast %107 : vector<32xf32> to vector<32x1xf32>
    %cst_47 = arith.constant dense<0.000000e+00> : vector<32x1xf32>
    %109 = tpu.matmul %4, %108, %cst_47 {dimension_numbers = #tpu.dot_dimension_numbers<[1], [0], [0], [1], [0, 0, 1, 1], [], []>} : vector<32x32xf32>, vector<32x1xf32>, vector<32x1xf32> -> vector<32x1xf32>
    %cst_48 = arith.constant 9.99999974E-6 : f32
    %110 = vector.broadcast %cst_48 : f32 to vector<32x1xf32>
    %111 = arith.addf %109, %110 : vector<32x1xf32>
    %112 = math.rsqrt %111 : vector<32x1xf32>
    %113 = arith.mulf %112, %2 : vector<32x1xf32>
    %114 = vector.broadcast %113 : vector<32x1xf32> to vector<32x256xf32>
    %115 = arith.mulf %105, %114 : vector<32x256xf32>
    %116 = vector.broadcast %3 : vector<32x1xf32> to vector<32x256xf32>
    %117 = arith.addf %115, %116 : vector<32x256xf32>
    %cst_49 = arith.constant 2.000000e+01 : f32
    %118 = vector.broadcast %cst_49 : f32 to vector<32x256xf32>
    %119 = arith.minimumf %117, %118 : vector<32x256xf32>
    %120 = math.exp %119 : vector<32x256xf32>
    %cst_50 = arith.constant 2.000000e+00 : f32
    %121 = vector.broadcast %cst_50 : f32 to vector<32x256xf32>
    %122 = arith.addf %120, %121 : vector<32x256xf32>
    %123 = arith.mulf %120, %122 : vector<32x256xf32>
    %124 = arith.mulf %117, %123 : vector<32x256xf32>
    %cst_51 = arith.constant 2.000000e+00 : f32
    %125 = vector.broadcast %cst_51 : f32 to vector<32x256xf32>
    %126 = arith.addf %123, %125 : vector<32x256xf32>
    %127 = tpu.reciprocal %126 {approx = true} : vector<32x256xf32> -> vector<32x256xf32>
    %128 = arith.mulf %124, %127 : vector<32x256xf32>
    %cst_52 = arith.constant 2.000000e+01 : f32
    %129 = vector.broadcast %cst_52 : f32 to vector<32x256xf32>
    %130 = arith.cmpf ogt, %117, %129 : vector<32x256xf32>
    %131 = arith.select %130, %117, %128 : vector<32x256xi1>, vector<32x256xf32>
    %132 = arith.index_cast %c0_i32_7 : i32 to index
    %c0_53 = arith.constant 0 : index
    %c0_54 = arith.constant 0 : index
    %133 = vector.load %arg5[%132, %c0_53, %c0_54] : memref<1x32x256xf32, #tpu.memory_space<vmem>>, vector<1x32x256xf32>
    %134 = vector.shape_cast %133 : vector<1x32x256xf32> to vector<32x256xf32>
    %135 = vector.shape_cast %131 : vector<32x256xf32> to vector<1x32x256xf32>
    tpu.vector_store %arg5[%132, %c0_53, %c0_54], %135 {strides = array<i32>} : memref<1x32x256xf32, #tpu.memory_space<vmem>>, vector<1x32x256xf32>,
    %c1_i32_55 = arith.constant 1 : i32
    return
  }
  func.func @transform_0(%arg0: i32) -> (i32, i32, i32) {
    %c0_i32 = arith.constant 0 : i32
    %c0_i32_0 = arith.constant 0 : i32
    %c0_i32_1 = arith.constant 0 : i32
    return %arg0, %c0_i32, %c0_i32_0 : i32, i32, i32
  }
  func.func @transform_1(%arg0: i32) -> (i32, i32, i32) {
    %c0_i32 = arith.constant 0 : i32
    %c0_i32_0 = arith.constant 0 : i32
    %c0_i32_1 = arith.constant 0 : i32
    %c0_i32_2 = arith.constant 0 : i32
    return %c0_i32, %c0_i32_0, %c0_i32_1 : i32, i32, i32
  }
  func.func @transform_2(%arg0: i32) -> (i32, i32) {
    %c0_i32 = arith.constant 0 : i32
    %c0_i32_0 = arith.constant 0 : i32
    %c0_i32_1 = arith.constant 0 : i32
    return %c0_i32, %c0_i32_0 : i32, i32
  }
  func.func @transform_3(%arg0: i32) -> (i32, i32) {
    %c0_i32 = arith.constant 0 : i32
    %c0_i32_0 = arith.constant 0 : i32
    %c0_i32_1 = arith.constant 0 : i32
    return %c0_i32, %c0_i32_0 : i32, i32
  }
  func.func @transform_4(%arg0: i32) -> (i32, i32, i32) {
    %c0_i32 = arith.constant 0 : i32
    %c0_i32_0 = arith.constant 0 : i32
    %c0_i32_1 = arith.constant 0 : i32
    return %arg0, %c0_i32, %c0_i32_0 : i32, i32, i32
  }
}

</mosaic_0001>

<llo_original>
// kernel: tpu_custom_call.1
$region0: #{tpu_custom_call.1}
  #allocation0 [shape = 'u32[]', space=smem, size = 0x4, offset = 0x4, fixed_abs, tag = 'smem constant byte address 0x4 - core index']
  #allocation1 [shape = 'u32[72,128]{1,0:T(1,128)}', space=vmem, size = 0x9000, scoped, tag = 'internal scratch']
  %s0 = inlined_call_operand.vmem [shape: f32[2,4,256], index: 0, kind: input, shape index: {}]
  %s1 = inlined_call_operand.vmem [shape: f32[9,32,4], index: 1, kind: input, shape index: {}]
  %s2 = inlined_call_operand.vmem [shape: f32[32,3], index: 2, kind: input, shape index: {}]
  %s3 = inlined_call_operand.vmem [shape: f32[32,32], index: 3, kind: input, shape index: {}]
  %s4 = inlined_call_operand.hbm [shape: f32[2,32,256], index: 4, kind: output, shape index: {}]
  %s5 = sld [smem:[#allocation0]]
  $region49: #{tpu_custom_call.1} parent=0
    _
  %s7 = ssub.s32 1, %s5
  %s8 = scalar_select 0, %s7, %s5
  $region1: #{tpu_custom_call.1} parent=0
    #allocation2 [shape = 'u8[65536]{0}', space=vmem, size = 0x10000, scoped, tag = 'output window, operand 0']
    #allocation3 [shape = 's32[2]{0}', space=sflag, size = 0x8, scoped, tag = 'scoped memory for tpu_custom_call.1']
    %9 = vsyncpa [#allocation3], 0
    %s10 = scalar_lea.sflag [#allocation3], 1
    %11 = vsyncpa %s10, 0
    loop: start=0, step=1, limit=4
    $region2: #{tpu_custom_call.1} parent=1 // loop_pre_header
      _
    $region3: #{tpu_custom_call.1} parent=1 // loop_header
      %s13 = sphi 0, %s17
      %p14 = scmp.ge.s32.totalorder %s13, 4
      %s23 = sphi 0, %s25
      %s26 = sphi 0, %s23
      %s27 = sphi 0, %s26
      %s43 = sphi 0, %s27
      %s47 = sphi 0, %s47
      %s49 = sphi 0, %s47
      %s50 = sphi 0, %s49
      %s64 = sphi 0, %s50
      %s68 = sphi 0, %s68
      %s70 = sphi 0, %s68
      %s71 = sphi 0, %s70
      %s85 = sphi 0, %s71
      %s89 = sphi 0, %s89
      %s91 = sphi 0, %s89
      %s92 = sphi 0, %s91
      %s106 = sphi 0, %s92
      %s112 = sphi 0, %s114
      %s115 = sphi 0, %s112
      %s116 = sphi 0, %s115
      %s132 = sphi 0, %s116
    $region4: #{tpu_custom_call.1} parent=1 // loop_header_branch
      %16 = sbr.rel (%p14) target = $region8
    $region5: #{tpu_custom_call.1} parent=1 // loop_body
      %s18 = ssub.s32 %s13, 1
      %s19 = ssub.s32 %s13, 2
      %s20 = sadd.s32 %s13, 1
      %s21 = ssub.s32 %s13, %s20
      %p22 = scmp.eq.s32.totalorder %s21, 0
      %s24 = sadd.s32 %s23, 1
      %s25 = scalar_select %p22, %s23, %s24
      %p28 = pneg %p22
      %p29 = scmp.eq.s32.totalorder %s13, 1
      %p30 = por %p28, %p29
      %p31 = scmp.ne.s32.totalorder %s23, %s26
      %p32 = scmp.eq.s32.totalorder %s13, 0
      %p33 = por %p31, %p32
      %p34 = scmp.ne.s32.totalorder %s23, %s26
      %p35 = scmp.eq.s32.totalorder %s18, 1
      %p36 = por %p34, %p35
      %p37 = scmp.ne.s32.totalorder %s26, %s27
      %p38 = scmp.eq.s32.totalorder %s18, 0
      %p39 = por %p37, %p38
      %p40 = scmp.ne.s32.totalorder %s26, %s27
      %p41 = scmp.eq.s32.totalorder %s19, 1
      %p42 = por %p40, %p41
      %p44 = scmp.ne.s32.totalorder %s27, %s43
      %p45 = scmp.eq.s32.totalorder %s19, 0
      %p46 = por %p44, %p45
      %s48 = sadd.s32 %s47, 1
      %p51 = scmp.eq.s32.totalorder %s13, 1
      %p52 = scmp.ne.s32.totalorder %s47, %s49
      %p53 = scmp.eq.s32.totalorder %s13, 0
      %p54 = por %p52, %p53
      %p55 = scmp.ne.s32.totalorder %s47, %s49
      %p56 = scmp.eq.s32.totalorder %s18, 1
      %p57 = por %p55, %p56
      %p58 = scmp.ne.s32.totalorder %s49, %s50
      %p59 = scmp.eq.s32.totalorder %s18, 0
      %p60 = por %p58, %p59
      %p61 = scmp.ne.s32.totalorder %s49, %s50
      %p62 = scmp.eq.s32.totalorder %s19, 1
      %p63 = por %p61, %p62
      %p65 = scmp.ne.s32.totalorder %s50, %s64
      %p66 = scmp.eq.s32.totalorder %s19, 0
      %p67 = por %p65, %p66
      %s69 = sadd.s32 %s68, 1
      %p72 = scmp.eq.s32.totalorder %s13, 1
      %p73 = scmp.ne.s32.totalorder %s68, %s70
      %p74 = scmp.eq.s32.totalorder %s13, 0
      %p75 = por %p73, %p74
      %p76 = scmp.ne.s32.totalorder %s68, %s70
      %p77 = scmp.eq.s32.totalorder %s18, 1
      %p78 = por %p76, %p77
      %p79 = scmp.ne.s32.totalorder %s70, %s71
      %p80 = scmp.eq.s32.totalorder %s18, 0
      %p81 = por %p79, %p80
      %p82 = scmp.ne.s32.totalorder %s70, %s71
      %p83 = scmp.eq.s32.totalorder %s19, 1
      %p84 = por %p82, %p83
      %p86 = scmp.ne.s32.totalorder %s71, %s85
      %p87 = scmp.eq.s32.totalorder %s19, 0
      %p88 = por %p86, %p87
      %s90 = sadd.s32 %s89, 1
      %p93 = scmp.eq.s32.totalorder %s13, 1
      %p94 = scmp.ne.s32.totalorder %s89, %s91
      %p95 = scmp.eq.s32.totalorder %s13, 0
      %p96 = por %p94, %p95
      %p97 = scmp.ne.s32.totalorder %s89, %s91
      %p98 = scmp.eq.s32.totalorder %s18, 1
      %p99 = por %p97, %p98
      %p100 = scmp.ne.s32.totalorder %s91, %s92
      %p101 = scmp.eq.s32.totalorder %s18, 0
      %p102 = por %p100, %p101
      %p103 = scmp.ne.s32.totalorder %s91, %s92
      %p104 = scmp.eq.s32.totalorder %s19, 1
      %p105 = por %p103, %p104
      %p107 = scmp.ne.s32.totalorder %s92, %s106
      %p108 = scmp.eq.s32.totalorder %s19, 0
      %p109 = por %p107, %p108
      %s110 = ssub.s32 %s13, %s20
      %p111 = scmp.eq.s32.totalorder %s110, 0
      %s113 = sadd.s32 %s112, 1
      %s114 = scalar_select %p111, %s112, %s113
      %p117 = pneg %p111
      %p118 = scmp.eq.s32.totalorder %s13, 1
      %p119 = por %p117, %p118
      %p120 = scmp.ne.s32.totalorder %s112, %s115
      %p121 = scmp.eq.s32.totalorder %s13, 0
      %p122 = por %p120, %p121
      %p123 = scmp.ne.s32.totalorder %s112, %s115
      %p124 = scmp.eq.s32.totalorder %s18, 1
      %p125 = por %p123, %p124
      %p126 = scmp.ne.s32.totalorder %s115, %s116
      %p127 = scmp.eq.s32.totalorder %s18, 0
      %p128 = por %p126, %p127
      %p129 = scmp.ne.s32.totalorder %s115, %s116
      %p130 = scmp.eq.s32.totalorder %s19, 1
      %p131 = por %p129, %p130
      %p133 = scmp.ne.s32.totalorder %s116, %s132
      %p134 = scmp.eq.s32.totalorder %s19, 0
      %p135 = por %p133, %p134
      %p136 = scmp.le.s32.totalorder 1, %s13
      %p137 = scmp.lt.s32.totalorder %s13, 3
      %p138 = pnand %p136, %p137
      %p139 = pneg %p138
      // Predicated region
      $region9: #{tpu_custom_call.1} parent=5 // pred_check
        _
      $region10: #{tpu_custom_call.1} parent=5 // pred_check_branch
        %141 = sbr.rel (%p138) target = $region12
      $region11: #{tpu_custom_call.1} parent=5 // pred_region
        %s142 = ssub.s32 %s13, 1
        // Predicated region
        $region13: #{tpu_custom_call.1} parent=11 // pred_check
          %p143 = pneg %p60
        $region14: #{tpu_custom_call.1} parent=11 // pred_check_branch
          %145 = sbr.rel (%p143) target = $region16
        $region15: #{tpu_custom_call.1} parent=11 // pred_region
          _
        $region16: #{tpu_custom_call.1} parent=11 // pred_fallthru
          _
        // Predicated region
        $region17: #{tpu_custom_call.1} parent=11 // pred_check
          %p146 = pneg %p81
        $region18: #{tpu_custom_call.1} parent=11 // pred_check_branch
          %148 = sbr.rel (%p146) target = $region20
        $region19: #{tpu_custom_call.1} parent=11 // pred_region
          _
        $region20: #{tpu_custom_call.1} parent=11 // pred_fallthru
          _
        // Predicated region
        $region21: #{tpu_custom_call.1} parent=11 // pred_check
          %p149 = pneg %p102
        $region22: #{tpu_custom_call.1} parent=11 // pred_check_branch
          %151 = sbr.rel (%p149) target = $region24
        $region23: #{tpu_custom_call.1} parent=11 // pred_region
          _
        $region24: #{tpu_custom_call.1} parent=11 // pred_fallthru
          _
      $region12: #{tpu_custom_call.1} parent=5 // pred_fallthru
        _
      %p152 = scmp.lt.s32.totalorder %s13, 2
      // Predicated region
      $region25: #{tpu_custom_call.1} parent=5 // pred_check
        %p153 = pneg %p152
      $region26: #{tpu_custom_call.1} parent=5 // pred_check_branch
        %155 = sbr.rel (%p153) target = $region28
      $region27: #{tpu_custom_call.1} parent=5 // pred_region
        // Predicated region
        $region29: #{tpu_custom_call.1} parent=27 // pred_check
          %p156 = pneg %p33
        $region30: #{tpu_custom_call.1} parent=27 // pred_check_branch
          %158 = sbr.rel (%p156) target = $region32
        $region31: #{tpu_custom_call.1} parent=27 // pred_region
          %p159 = scmp.lt.s32.totalorder %s13, 1
          %s160 = scalar_select %p159, %s13, 1
          %s161 = smul.addr %s160, 2
          %s162 = smul.addr %s161, 4
          %s163 = scalar_lea.vmem %s0, %s162
        $region32: #{tpu_custom_call.1} parent=27 // pred_fallthru
          _
      $region28: #{tpu_custom_call.1} parent=5 // pred_fallthru
        _
      %p164 = scmp.le.s32.totalorder 1, %s13
      %p165 = scmp.lt.s32.totalorder %s13, 3
      %p166 = pnand %p164, %p165
      %p167 = pneg %p166
      // Predicated region
      $region33: #{tpu_custom_call.1} parent=5 // pred_check
        _
      $region34: #{tpu_custom_call.1} parent=5 // pred_check_branch
        %169 = sbr.rel (%p166) target = $region36
      $region35: #{tpu_custom_call.1} parent=5 // pred_region
        %s170 = ssub.s32 %s13, 1
        %p171 = scmp.lt.s32.totalorder %s18, 1
        %s172 = scalar_select %p171, %s18, 1
        %s173 = smul.addr %s172, 2
        %s174 = smul.addr %s173, 4
        %s175 = scalar_lea.vmem %s0, %s174
        %p176 = pneg %p39
        %p177 = pneg %p36
        %p178 = pneg %p60
        %p179 = pneg %p57
        %p180 = pneg %p81
        %p181 = pneg %p78
        %p182 = pneg %p102
        %p183 = pneg %p99
        %p184 = pneg %p128
        %p185 = pneg %p125
        %s186 = sand.u32 %s115, 1
        %s187 = scalar_lea.sflag [#allocation3], %s186
        %s188 = sand.u32 %s115, 1
        %s189 = smul.addr %s188, 64
        %s190 = scalar_lea.vmem [#allocation2], %s189
        %p191 = scmp.lt.s32.totalorder %s18, 1
        %s192 = scalar_select %p191, %s18, 1
        %s193 = smul.addr %s192, 2
        %s194 = smul.addr %s193, 4
        %s195 = scalar_lea.vmem %s0, %s194
        %v196 = vld [vmem:[%s2] sm:$0xff]
        %v197 = vld [vmem:[%s2 + $0x8] sm:$0xff]
        %v198 = vld [vmem:[%s2 + $0x10] sm:$0xff]
        %v199 = vld [vmem:[%s2 + $0x18] sm:$0xff]
        %v200 = vld [vmem:[%s3] sm:$0xff]
        %v201 = vld [vmem:[%s3 + $0x8] sm:$0xff]
        %v202 = vld [vmem:[%s3 + $0x10] sm:$0xff]
        %v203 = vld [vmem:[%s3 + $0x18] sm:$0xff]
        %v204 = vlaneseq
        %v205 = vand.u32 %v204, 127
        %v206 = vadd.s32 %v205, 128
        %vm207 = vcmp.lt.s32.totalorder %v205, 0
        %v208 = vsub.s32 0, %v205
        %v209 = vsel %vm207, %v208, %v205
        %v210 = vshrl.u32 %v209, 4
        %v211 = vand.u32 %v209, 15
        %v212 = vsub.s32 0, %v211
        %v213 = vsel %vm207, %v212, %v211
        %vm214 = vcmp.lt.s32.totalorder %v206, 0
        %v215 = vsub.s32 0, %v206
        %v216 = vsel %vm214, %v215, %v206
        %v217 = vshrl.u32 %v216, 4
        %v218 = vand.u32 %v216, 15
        %v219 = vsub.s32 0, %v218
        %v220 = vsel %vm214, %v219, %v218
        %vm221 = vcmp.ne.s32.totalorder %v213, 0
        %vm222 = vcmp.ne.s32.totalorder %v220, 0
        %vm223 = vcmp.lt.s32.totalorder %v213, 0
        %vm224 = vcmp.lt.s32.totalorder %v220, 0
        %vm225 = vmand %vm223, %vm221
        %vm226 = vmand %vm224, %vm222
        %v227 = vadd.s32 %v213, 16
        %v228 = vadd.s32 %v220, 16
        %v229 = vsel %vm225, %v227, %v213
        %v230 = vsel %vm226, %v228, %v220
        %vm231 = vcmp.ge.s32.totalorder %v229, 1
        %vm232 = vcmp.ge.s32.totalorder %v230, 1
        %vm233 = vcmp.le.s32.totalorder %v229, 14
        %vm234 = vcmp.le.s32.totalorder %v230, 14
        %v235 = vld [vmem:[%s195] sm:$0xff]
        %237 = vst [vmem:[#allocation1] ss:$2 sm:$0xff] %v235
        %v238 = vld.sshfl [vmem:[#allocation1] sm:$0xff pattern:$0x75316420]
        %v239 = vld.sshfl [vmem:[#allocation1 + $0x8] sm:$0xff pattern:$0x75316420]
        %240 = vrot.lane.b32.xlu0 %v238, 17
        %v241 = vpop.permute.xlu0 %240
        %242 = vrot.lane.b32.xlu0 %v239, 17
        %v243 = vpop.permute.xlu0 %242
        %vm244 = vcmask 138240
        %v245 = vsel %vm244, %v241, %v243
        %v249 = vsel %vm244, 0.0, %v241
        %v250 = vsel %vm244, %v243, 0.0
        %v251 = vsel %vm231, 1, 0
        %v252 = vsel %vm232, 1, 0
        %vm253 = vcmp.eq.s32.totalorder %v251, 1
        %vm254 = vcmp.eq.s32.totalorder %v252, 1
        %v255 = vsel %vm253, %v249, 0.0
        %v256 = vsel %vm254, %v245, 0.0
        %v257 = vld [vmem:[%s1] sm:$0xff]
        %v258 = vld [vmem:[%s1 + $0x8] sm:$0xff]
        %v259 = vld [vmem:[%s1 + $0x10] sm:$0xff]
        %v260 = vld [vmem:[%s1 + $0x18] sm:$0xff]
        %s261 = scalar_lea.vmem %s1, 32
        %v262 = vld [vmem:[%s261] sm:$0xff]
        %v263 = vld [vmem:[%s261 + $0x8] sm:$0xff]
        %v264 = vld [vmem:[%s261 + $0x10] sm:$0xff]
        %v265 = vld [vmem:[%s261 + $0x18] sm:$0xff]
        %268 = vrot.lane.b32.xlu0 %v249, 127
        %v269 = vpop.permute.xlu0 %268
        %270 = vrot.lane.b32.xlu0 %v245, 127
        %v271 = vpop.permute.xlu0 %270
        %272 = vrot.lane.b32.xlu0 %v250, 127
        %v273 = vpop.permute.xlu0 %272
        %vm274 = vcmask 1039360
        %v275 = vsel %vm274, %v269, %v271
        %v276 = vsel %vm274, %v271, %v273
        %vm277 = vcmask 31744
        %v279 = vsel %vm277, %v262, 0
        %v282 = vsel %vm277, %v263, 0
        %v285 = vsel %vm277, %v264, 0
        %v288 = vsel %vm277, %v265, 0
        %vm290 = vcmask 1043456
        %v291 = vsel %vm290, %v275, 0
        %v293 = vsel %vm290, %v276, 0
        %295 = vmatpush.msra.mxu0 0.0
        %296 = vmatpush.msra.mxu0 0.0
        %297 = vmatpush.msra.mxu0 0.0
        %298 = vmatpush.msra.mxu0 0.0
        %299 = vmatpush.msra.mxu0 0.0
        %300 = vmatpush.msra.mxu0 0.0
        %301 = vmatpush.msra.mxu0 0.0
        %302 = vmatpush.msra.mxu0 0.0
        %303 = vmatpush.msra.mxu0 0.0
        %304 = vmatpush.msra.mxu0 0.0
        %305 = vmatpush.msra.mxu0 0.0
        %306 = vmatpush.msra.mxu0 0.0
        %307 = vmatpush.msra.mxu0 0.0
        %308 = vmatpush.msra.mxu0 0.0
        %309 = vmatpush.msra.mxu0 0.0
        %310 = vmatpush.msra.mxu0 %v291
        %311 = vmatmul.f32.gmra.mxu0 %v279
        %v312 = vpop.f32.mrf.mxu0
        %v313 = vadd.f32 0.0, %v312
        %314 = vmatmul.f32.gmra.mxu0 %v282
        %v315 = vpop.f32.mrf.mxu0
        %v316 = vadd.f32 0.0, %v315
        %317 = vmatmul.f32.gmra.mxu0 %v285
        %v318 = vpop.f32.mrf.mxu0
        %v319 = vadd.f32 0.0, %v318
        %320 = vmatmul.f32.gmra.mxu0 %v288
        %v321 = vpop.f32.mrf.mxu0
        %v322 = vadd.f32 0.0, %v321
        %323 = vdwg.mxu0
        %324 = vmatpush.msra.mxu0 0.0
        %325 = vmatpush.msra.mxu0 0.0
        %326 = vmatpush.msra.mxu0 0.0
        %327 = vmatpush.msra.mxu0 0.0
        %328 = vmatpush.msra.mxu0 0.0
        %329 = vmatpush.msra.mxu0 0.0
        %330 = vmatpush.msra.mxu0 0.0
        %331 = vmatpush.msra.mxu0 0.0
        %332 = vmatpush.msra.mxu0 0.0
        %333 = vmatpush.msra.mxu0 0.0
        %334 = vmatpush.msra.mxu0 0.0
        %335 = vmatpush.msra.mxu0 0.0
        %336 = vmatpush.msra.mxu0 0.0
        %337 = vmatpush.msra.mxu0 0.0
        %338 = vmatpush.msra.mxu0 0.0
        %339 = vmatpush.msra.mxu0 %v293
        %340 = vmatmul.f32.gmra.mxu0 %v279
        %v341 = vpop.f32.mrf.mxu0
        %v342 = vadd.f32 0.0, %v341
        %343 = vmatmul.f32.gmra.mxu0 %v282
        %v344 = vpop.f32.mrf.mxu0
        %v345 = vadd.f32 0.0, %v344
        %346 = vmatmul.f32.gmra.mxu0 %v285
        %v347 = vpop.f32.mrf.mxu0
        %v348 = vadd.f32 0.0, %v347
        %349 = vmatmul.f32.gmra.mxu0 %v288
        %v350 = vpop.f32.mrf.mxu0
        %v351 = vadd.f32 0.0, %v350
        %352 = vdwg.mxu0
        %v354 = vsel %vm277, %v257, 0
        %v357 = vsel %vm277, %v258, 0
        %v360 = vsel %vm277, %v259, 0
        %v363 = vsel %vm277, %v260, 0
        %v366 = vsel %vm290, %v255, 0
        %v369 = vsel %vm290, %v256, 0
        %371 = vmatpush.msra.mxu0 0.0
        %372 = vmatpush.msra.mxu0 0.0
        %373 = vmatpush.msra.mxu0 0.0
        %374 = vmatpush.msra.mxu0 0.0
        %375 = vmatpush.msra.mxu0 0.0
        %376 = vmatpush.msra.mxu0 0.0
        %377 = vmatpush.msra.mxu0 0.0
        %378 = vmatpush.msra.mxu0 0.0
        %379 = vmatpush.msra.mxu0 0.0
        %380 = vmatpush.msra.mxu0 0.0
        %381 = vmatpush.msra.mxu0 0.0
        %382 = vmatpush.msra.mxu0 0.0
        %383 = vmatpush.msra.mxu0 0.0
        %384 = vmatpush.msra.mxu0 0.0
        %385 = vmatpush.msra.mxu0 0.0
        %386 = vmatpush.msra.mxu0 %v366
        %387 = vmatmul.f32.gmra.mxu0 %v354
        %v388 = vpop.f32.mrf.mxu0
        %v389 = vadd.f32 %v313, %v388
        %390 = vmatmul.f32.gmra.mxu0 %v357
        %v391 = vpop.f32.mrf.mxu0
        %v392 = vadd.f32 %v316, %v391
        %393 = vmatmul.f32.gmra.mxu0 %v360
        %v394 = vpop.f32.mrf.mxu0
        %v395 = vadd.f32 %v319, %v394
        %396 = vmatmul.f32.gmra.mxu0 %v363
        %v397 = vpop.f32.mrf.mxu0
        %v398 = vadd.f32 %v322, %v397
        %399 = vdwg.mxu0
        %400 = vmatpush.msra.mxu0 0.0
        %401 = vmatpush.msra.mxu0 0.0
        %402 = vmatpush.msra.mxu0 0.0
        %403 = vmatpush.msra.mxu0 0.0
        %404 = vmatpush.msra.mxu0 0.0
        %405 = vmatpush.msra.mxu0 0.0
        %406 = vmatpush.msra.mxu0 0.0
        %407 = vmatpush.msra.mxu0 0.0
        %408 = vmatpush.msra.mxu0 0.0
        %409 = vmatpush.msra.mxu0 0.0
        %410 = vmatpush.msra.mxu0 0.0
        %411 = vmatpush.msra.mxu0 0.0
        %412 = vmatpush.msra.mxu0 0.0
        %413 = vmatpush.msra.mxu0 0.0
        %414 = vmatpush.msra.mxu0 0.0
        %415 = vmatpush.msra.mxu0 %v369
        %416 = vmatmul.f32.gmra.mxu0 %v354
        %v417 = vpop.f32.mrf.mxu0
        %v418 = vadd.f32 %v342, %v417
        %419 = vmatmul.f32.gmra.mxu0 %v357
        %v420 = vpop.f32.mrf.mxu0
        %v421 = vadd.f32 %v345, %v420
        %422 = vmatmul.f32.gmra.mxu0 %v360
        %v423 = vpop.f32.mrf.mxu0
        %v424 = vadd.f32 %v348, %v423
        %425 = vmatmul.f32.gmra.mxu0 %v363
        %v426 = vpop.f32.mrf.mxu0
        %v427 = vadd.f32 %v351, %v426
        %428 = vdwg.mxu0
        %v429 = vsel %vm233, 1, 0
        %v430 = vsel %vm234, 1, 0
        %vm431 = vcmp.eq.s32.totalorder %v429, 1
        %vm432 = vcmp.eq.s32.totalorder %v430, 1
        %433 = vrot.lane.b32.xlu0 %v249, 126
        %v434 = vpop.permute.xlu0 %433
        %435 = vrot.lane.b32.xlu0 %v245, 126
        %v436 = vpop.permute.xlu0 %435
        %437 = vrot.lane.b32.xlu0 %v250, 126
        %v438 = vpop.permute.xlu0 %437
        %vm439 = vcmask 1031168
        %v440 = vsel %vm439, %v434, %v436
        %v441 = vsel %vm439, %v436, %v438
        %v444 = vsel %vm431, %v440, 0.0
        %v445 = vsel %vm432, %v441, 0.0
        %s446 = scalar_lea.vmem %s1, 64
        %v447 = vld [vmem:[%s446] sm:$0xff]
        %v448 = vld [vmem:[%s446 + $0x8] sm:$0xff]
        %v449 = vld [vmem:[%s446 + $0x10] sm:$0xff]
        %v450 = vld [vmem:[%s446 + $0x18] sm:$0xff]
        %v452 = vsel %vm277, %v447, 0
        %v455 = vsel %vm277, %v448, 0
        %v458 = vsel %vm277, %v449, 0
        %v461 = vsel %vm277, %v450, 0
        %v464 = vsel %vm290, %v444, 0
        %v467 = vsel %vm290, %v445, 0
        %469 = vmatpush.msra.mxu0 0.0
        %470 = vmatpush.msra.mxu0 0.0
        %471 = vmatpush.msra.mxu0 0.0
        %472 = vmatpush.msra.mxu0 0.0
        %473 = vmatpush.msra.mxu0 0.0
        %474 = vmatpush.msra.mxu0 0.0
        %475 = vmatpush.msra.mxu0 0.0
        %476 = vmatpush.msra.mxu0 0.0
        %477 = vmatpush.msra.mxu0 0.0
        %478 = vmatpush.msra.mxu0 0.0
        %479 = vmatpush.msra.mxu0 0.0
        %480 = vmatpush.msra.mxu0 0.0
        %481 = vmatpush.msra.mxu0 0.0
        %482 = vmatpush.msra.mxu0 0.0
        %483 = vmatpush.msra.mxu0 0.0
        %484 = vmatpush.msra.mxu0 %v464
        %485 = vmatmul.f32.gmra.mxu0 %v452
        %v486 = vpop.f32.mrf.mxu0
        %v487 = vadd.f32 0.0, %v486
        %488 = vmatmul.f32.gmra.mxu0 %v455
        %v489 = vpop.f32.mrf.mxu0
        %v490 = vadd.f32 0.0, %v489
        %491 = vmatmul.f32.gmra.mxu0 %v458
        %v492 = vpop.f32.mrf.mxu0
        %v493 = vadd.f32 0.0, %v492
        %494 = vmatmul.f32.gmra.mxu0 %v461
        %v495 = vpop.f32.mrf.mxu0
        %v496 = vadd.f32 0.0, %v495
        %497 = vdwg.mxu0
        %498 = vmatpush.msra.mxu0 0.0
        %499 = vmatpush.msra.mxu0 0.0
        %500 = vmatpush.msra.mxu0 0.0
        %501 = vmatpush.msra.mxu0 0.0
        %502 = vmatpush.msra.mxu0 0.0
        %503 = vmatpush.msra.mxu0 0.0
        %504 = vmatpush.msra.mxu0 0.0
        %505 = vmatpush.msra.mxu0 0.0
        %506 = vmatpush.msra.mxu0 0.0
        %507 = vmatpush.msra.mxu0 0.0
        %508 = vmatpush.msra.mxu0 0.0
        %509 = vmatpush.msra.mxu0 0.0
        %510 = vmatpush.msra.mxu0 0.0
        %511 = vmatpush.msra.mxu0 0.0
        %512 = vmatpush.msra.mxu0 0.0
        %513 = vmatpush.msra.mxu0 %v467
        %514 = vmatmul.f32.gmra.mxu0 %v452
        %v515 = vpop.f32.mrf.mxu0
        %v516 = vadd.f32 0.0, %v515
        %517 = vmatmul.f32.gmra.mxu0 %v455
        %v518 = vpop.f32.mrf.mxu0
        %v519 = vadd.f32 0.0, %v518
        %520 = vmatmul.f32.gmra.mxu0 %v458
        %v521 = vpop.f32.mrf.mxu0
        %v522 = vadd.f32 0.0, %v521
        %523 = vmatmul.f32.gmra.mxu0 %v461
        %v524 = vpop.f32.mrf.mxu0
        %v525 = vadd.f32 0.0, %v524
        %526 = vdwg.mxu0
        %v527 = vadd.f32 %v389, %v487
        %v528 = vadd.f32 %v418, %v516
        %v529 = vadd.f32 %v392, %v490
        %v530 = vadd.f32 %v421, %v519
        %v531 = vadd.f32 %v395, %v493
        %v532 = vadd.f32 %v424, %v522
        %v533 = vadd.f32 %v398, %v496
        %v534 = vadd.f32 %v427, %v525
        %535 = vrot.lane.b32.xlu0 %v249, 112
        %v536 = vpop.permute.xlu0 %535
        %537 = vrot.lane.b32.xlu0 %v245, 112
        %v538 = vpop.permute.xlu0 %537
        %539 = vrot.lane.b32.xlu0 %v250, 112
        %v540 = vpop.permute.xlu0 %539
        %vm541 = vcmask 916480
        %v542 = vsel %vm541, %v536, %v538
        %v543 = vsel %vm541, %v538, %v540
        %v546 = vsel %vm253, %v542, 0.0
        %v547 = vsel %vm254, %v543, 0.0
        %s548 = scalar_lea.vmem %s1, 96
        %v549 = vld [vmem:[%s548] sm:$0xff]
        %v550 = vld [vmem:[%s548 + $0x8] sm:$0xff]
        %v551 = vld [vmem:[%s548 + $0x10] sm:$0xff]
        %v552 = vld [vmem:[%s548 + $0x18] sm:$0xff]
        %v554 = vsel %vm277, %v549, 0
        %v557 = vsel %vm277, %v550, 0
        %v560 = vsel %vm277, %v551, 0
        %v563 = vsel %vm277, %v552, 0
        %v566 = vsel %vm290, %v546, 0
        %v569 = vsel %vm290, %v547, 0
        %571 = vmatpush.msra.mxu0 0.0
        %572 = vmatpush.msra.mxu0 0.0
        %573 = vmatpush.msra.mxu0 0.0
        %574 = vmatpush.msra.mxu0 0.0
        %575 = vmatpush.msra.mxu0 0.0
        %576 = vmatpush.msra.mxu0 0.0
        %577 = vmatpush.msra.mxu0 0.0
        %578 = vmatpush.msra.mxu0 0.0
        %579 = vmatpush.msra.mxu0 0.0
        %580 = vmatpush.msra.mxu0 0.0
        %581 = vmatpush.msra.mxu0 0.0
        %582 = vmatpush.msra.mxu0 0.0
        %583 = vmatpush.msra.mxu0 0.0
        %584 = vmatpush.msra.mxu0 0.0
        %585 = vmatpush.msra.mxu0 0.0
        %586 = vmatpush.msra.mxu0 %v566
        %587 = vmatmul.f32.gmra.mxu0 %v554
        %v588 = vpop.f32.mrf.mxu0
        %v589 = vadd.f32 0.0, %v588
        %590 = vmatmul.f32.gmra.mxu0 %v557
        %v591 = vpop.f32.mrf.mxu0
        %v592 = vadd.f32 0.0, %v591
        %593 = vmatmul.f32.gmra.mxu0 %v560
        %v594 = vpop.f32.mrf.mxu0
        %v595 = vadd.f32 0.0, %v594
        %596 = vmatmul.f32.gmra.mxu0 %v563
        %v597 = vpop.f32.mrf.mxu0
        %v598 = vadd.f32 0.0, %v597
        %599 = vdwg.mxu0
        %600 = vmatpush.msra.mxu0 0.0
        %601 = vmatpush.msra.mxu0 0.0
        %602 = vmatpush.msra.mxu0 0.0
        %603 = vmatpush.msra.mxu0 0.0
        %604 = vmatpush.msra.mxu0 0.0
        %605 = vmatpush.msra.mxu0 0.0
        %606 = vmatpush.msra.mxu0 0.0
        %607 = vmatpush.msra.mxu0 0.0
        %608 = vmatpush.msra.mxu0 0.0
        %609 = vmatpush.msra.mxu0 0.0
        %610 = vmatpush.msra.mxu0 0.0
        %611 = vmatpush.msra.mxu0 0.0
        %612 = vmatpush.msra.mxu0 0.0
        %613 = vmatpush.msra.mxu0 0.0
        %614 = vmatpush.msra.mxu0 0.0
        %615 = vmatpush.msra.mxu0 %v569
        %616 = vmatmul.f32.gmra.mxu0 %v554
        %v617 = vpop.f32.mrf.mxu0
        %v618 = vadd.f32 0.0, %v617
        %619 = vmatmul.f32.gmra.mxu0 %v557
        %v620 = vpop.f32.mrf.mxu0
        %v621 = vadd.f32 0.0, %v620
        %622 = vmatmul.f32.gmra.mxu0 %v560
        %v623 = vpop.f32.mrf.mxu0
        %v624 = vadd.f32 0.0, %v623
        %625 = vmatmul.f32.gmra.mxu0 %v563
        %v626 = vpop.f32.mrf.mxu0
        %v627 = vadd.f32 0.0, %v626
        %628 = vdwg.mxu0
        %v629 = vadd.f32 %v527, %v589
        %v630 = vadd.f32 %v528, %v618
        %v631 = vadd.f32 %v529, %v592
        %v632 = vadd.f32 %v530, %v621
        %v633 = vadd.f32 %v531, %v595
        %v634 = vadd.f32 %v532, %v624
        %v635 = vadd.f32 %v533, %v598
        %v636 = vadd.f32 %v534, %v627
        %s637 = scalar_lea.vmem %s1, 128
        %v638 = vld [vmem:[%s637] sm:$0xff]
        %v639 = vld [vmem:[%s637 + $0x8] sm:$0xff]
        %v640 = vld [vmem:[%s637 + $0x10] sm:$0xff]
        %v641 = vld [vmem:[%s637 + $0x18] sm:$0xff]
        %642 = vrot.lane.b32.xlu0 %v249, 111
        %v643 = vpop.permute.xlu0 %642
        %644 = vrot.lane.b32.xlu0 %v245, 111
        %v645 = vpop.permute.xlu0 %644
        %646 = vrot.lane.b32.xlu0 %v250, 111
        %v647 = vpop.permute.xlu0 %646
        %vm648 = vcmask 908288
        %v649 = vsel %vm648, %v643, %v645
        %v650 = vsel %vm648, %v645, %v647
        %v652 = vsel %vm277, %v638, 0
        %v655 = vsel %vm277, %v639, 0
        %v658 = vsel %vm277, %v640, 0
        %v661 = vsel %vm277, %v641, 0
        %v663 = vsel %vm290, %v649, 0
        %v665 = vsel %vm290, %v650, 0
        %667 = vmatpush.msra.mxu0 0.0
        %668 = vmatpush.msra.mxu0 0.0
        %669 = vmatpush.msra.mxu0 0.0
        %670 = vmatpush.msra.mxu0 0.0
        %671 = vmatpush.msra.mxu0 0.0
        %672 = vmatpush.msra.mxu0 0.0
        %673 = vmatpush.msra.mxu0 0.0
        %674 = vmatpush.msra.mxu0 0.0
        %675 = vmatpush.msra.mxu0 0.0
        %676 = vmatpush.msra.mxu0 0.0
        %677 = vmatpush.msra.mxu0 0.0
        %678 = vmatpush.msra.mxu0 0.0
        %679 = vmatpush.msra.mxu0 0.0
        %680 = vmatpush.msra.mxu0 0.0
        %681 = vmatpush.msra.mxu0 0.0
        %682 = vmatpush.msra.mxu0 %v663
        %683 = vmatmul.f32.gmra.mxu0 %v652
        %v684 = vpop.f32.mrf.mxu0
        %v685 = vadd.f32 0.0, %v684
        %686 = vmatmul.f32.gmra.mxu0 %v655
        %v687 = vpop.f32.mrf.mxu0
        %v688 = vadd.f32 0.0, %v687
        %689 = vmatmul.f32.gmra.mxu0 %v658
        %v690 = vpop.f32.mrf.mxu0
        %v691 = vadd.f32 0.0, %v690
        %692 = vmatmul.f32.gmra.mxu0 %v661
        %v693 = vpop.f32.mrf.mxu0
        %v694 = vadd.f32 0.0, %v693
        %695 = vdwg.mxu0
        %696 = vmatpush.msra.mxu0 0.0
        %697 = vmatpush.msra.mxu0 0.0
        %698 = vmatpush.msra.mxu0 0.0
        %699 = vmatpush.msra.mxu0 0.0
        %700 = vmatpush.msra.mxu0 0.0
        %701 = vmatpush.msra.mxu0 0.0
        %702 = vmatpush.msra.mxu0 0.0
        %703 = vmatpush.msra.mxu0 0.0
        %704 = vmatpush.msra.mxu0 0.0
        %705 = vmatpush.msra.mxu0 0.0
        %706 = vmatpush.msra.mxu0 0.0
        %707 = vmatpush.msra.mxu0 0.0
        %708 = vmatpush.msra.mxu0 0.0
        %709 = vmatpush.msra.mxu0 0.0
        %710 = vmatpush.msra.mxu0 0.0
        %711 = vmatpush.msra.mxu0 %v665
        %712 = vmatmul.f32.gmra.mxu0 %v652
        %v713 = vpop.f32.mrf.mxu0
        %v714 = vadd.f32 0.0, %v713
        %715 = vmatmul.f32.gmra.mxu0 %v655
        %v716 = vpop.f32.mrf.mxu0
        %v717 = vadd.f32 0.0, %v716
        %718 = vmatmul.f32.gmra.mxu0 %v658
        %v719 = vpop.f32.mrf.mxu0
        %v720 = vadd.f32 0.0, %v719
        %721 = vmatmul.f32.gmra.mxu0 %v661
        %v722 = vpop.f32.mrf.mxu0
        %v723 = vadd.f32 0.0, %v722
        %724 = vdwg.mxu0
        %v725 = vadd.f32 %v629, %v685
        %v726 = vadd.f32 %v630, %v714
        %v727 = vadd.f32 %v631, %v688
        %v728 = vadd.f32 %v632, %v717
        %v729 = vadd.f32 %v633, %v691
        %v730 = vadd.f32 %v634, %v720
        %v731 = vadd.f32 %v635, %v694
        %v732 = vadd.f32 %v636, %v723
        %733 = vrot.lane.b32.xlu0 %v249, 110
        %v734 = vpop.permute.xlu0 %733
        %735 = vrot.lane.b32.xlu0 %v245, 110
        %v736 = vpop.permute.xlu0 %735
        %737 = vrot.lane.b32.xlu0 %v250, 110
        %v738 = vpop.permute.xlu0 %737
        %vm739 = vcmask 900096
        %v740 = vsel %vm739, %v734, %v736
        %v741 = vsel %vm739, %v736, %v738
        %v744 = vsel %vm431, %v740, 0.0
        %v745 = vsel %vm432, %v741, 0.0
        %s746 = scalar_lea.vmem %s1, 160
        %v747 = vld [vmem:[%s746] sm:$0xff]
        %v748 = vld [vmem:[%s746 + $0x8] sm:$0xff]
        %v749 = vld [vmem:[%s746 + $0x10] sm:$0xff]
        %v750 = vld [vmem:[%s746 + $0x18] sm:$0xff]
        %v752 = vsel %vm277, %v747, 0
        %v755 = vsel %vm277, %v748, 0
        %v758 = vsel %vm277, %v749, 0
        %v761 = vsel %vm277, %v750, 0
        %v764 = vsel %vm290, %v744, 0
        %v767 = vsel %vm290, %v745, 0
        %769 = vmatpush.msra.mxu0 0.0
        %770 = vmatpush.msra.mxu0 0.0
        %771 = vmatpush.msra.mxu0 0.0
        %772 = vmatpush.msra.mxu0 0.0
        %773 = vmatpush.msra.mxu0 0.0
        %774 = vmatpush.msra.mxu0 0.0
        %775 = vmatpush.msra.mxu0 0.0
        %776 = vmatpush.msra.mxu0 0.0
        %777 = vmatpush.msra.mxu0 0.0
        %778 = vmatpush.msra.mxu0 0.0
        %779 = vmatpush.msra.mxu0 0.0
        %780 = vmatpush.msra.mxu0 0.0
        %781 = vmatpush.msra.mxu0 0.0
        %782 = vmatpush.msra.mxu0 0.0
        %783 = vmatpush.msra.mxu0 0.0
        %784 = vmatpush.msra.mxu0 %v764
        %785 = vmatmul.f32.gmra.mxu0 %v752
        %v786 = vpop.f32.mrf.mxu0
        %v787 = vadd.f32 0.0, %v786
        %788 = vmatmul.f32.gmra.mxu0 %v755
        %v789 = vpop.f32.mrf.mxu0
        %v790 = vadd.f32 0.0, %v789
        %791 = vmatmul.f32.gmra.mxu0 %v758
        %v792 = vpop.f32.mrf.mxu0
        %v793 = vadd.f32 0.0, %v792
        %794 = vmatmul.f32.gmra.mxu0 %v761
        %v795 = vpop.f32.mrf.mxu0
        %v796 = vadd.f32 0.0, %v795
        %797 = vdwg.mxu0
        %798 = vmatpush.msra.mxu0 0.0
        %799 = vmatpush.msra.mxu0 0.0
        %800 = vmatpush.msra.mxu0 0.0
        %801 = vmatpush.msra.mxu0 0.0
        %802 = vmatpush.msra.mxu0 0.0
        %803 = vmatpush.msra.mxu0 0.0
        %804 = vmatpush.msra.mxu0 0.0
        %805 = vmatpush.msra.mxu0 0.0
        %806 = vmatpush.msra.mxu0 0.0
        %807 = vmatpush.msra.mxu0 0.0
        %808 = vmatpush.msra.mxu0 0.0
        %809 = vmatpush.msra.mxu0 0.0
        %810 = vmatpush.msra.mxu0 0.0
        %811 = vmatpush.msra.mxu0 0.0
        %812 = vmatpush.msra.mxu0 0.0
        %813 = vmatpush.msra.mxu0 %v767
        %814 = vmatmul.f32.gmra.mxu0 %v752
        %v815 = vpop.f32.mrf.mxu0
        %v816 = vadd.f32 0.0, %v815
        %817 = vmatmul.f32.gmra.mxu0 %v755
        %v818 = vpop.f32.mrf.mxu0
        %v819 = vadd.f32 0.0, %v818
        %820 = vmatmul.f32.gmra.mxu0 %v758
        %v821 = vpop.f32.mrf.mxu0
        %v822 = vadd.f32 0.0, %v821
        %823 = vmatmul.f32.gmra.mxu0 %v761
        %v824 = vpop.f32.mrf.mxu0
        %v825 = vadd.f32 0.0, %v824
        %826 = vdwg.mxu0
        %v827 = vadd.f32 %v725, %v787
        %v828 = vadd.f32 %v726, %v816
        %v829 = vadd.f32 %v727, %v790
        %v830 = vadd.f32 %v728, %v819
        %v831 = vadd.f32 %v729, %v793
        %v832 = vadd.f32 %v730, %v822
        %v833 = vadd.f32 %v731, %v796
        %v834 = vadd.f32 %v732, %v825
        %835 = vrot.lane.b32.xlu0 %v249, 96
        %v836 = vpop.permute.xlu0 %835
        %837 = vrot.lane.b32.xlu0 %v245, 96
        %v838 = vpop.permute.xlu0 %837
        %839 = vrot.lane.b32.xlu0 %v250, 96
        %v840 = vpop.permute.xlu0 %839
        %vm841 = vcmask 785408
        %v842 = vsel %vm841, %v836, %v838
        %v843 = vsel %vm841, %v838, %v840
        %v846 = vsel %vm253, %v842, 0.0
        %v847 = vsel %vm254, %v843, 0.0
        %s848 = scalar_lea.vmem %s1, 192
        %v849 = vld [vmem:[%s848] sm:$0xff]
        %v850 = vld [vmem:[%s848 + $0x8] sm:$0xff]
        %v851 = vld [vmem:[%s848 + $0x10] sm:$0xff]
        %v852 = vld [vmem:[%s848 + $0x18] sm:$0xff]
        %v854 = vsel %vm277, %v849, 0
        %v857 = vsel %vm277, %v850, 0
        %v860 = vsel %vm277, %v851, 0
        %v863 = vsel %vm277, %v852, 0
        %v866 = vsel %vm290, %v846, 0
        %v869 = vsel %vm290, %v847, 0
        %871 = vmatpush.msra.mxu0 0.0
        %872 = vmatpush.msra.mxu0 0.0
        %873 = vmatpush.msra.mxu0 0.0
        %874 = vmatpush.msra.mxu0 0.0
        %875 = vmatpush.msra.mxu0 0.0
        %876 = vmatpush.msra.mxu0 0.0
        %877 = vmatpush.msra.mxu0 0.0
        %878 = vmatpush.msra.mxu0 0.0
        %879 = vmatpush.msra.mxu0 0.0
        %880 = vmatpush.msra.mxu0 0.0
        %881 = vmatpush.msra.mxu0 0.0
        %882 = vmatpush.msra.mxu0 0.0
        %883 = vmatpush.msra.mxu0 0.0
        %884 = vmatpush.msra.mxu0 0.0
        %885 = vmatpush.msra.mxu0 0.0
        %886 = vmatpush.msra.mxu0 %v866
        %887 = vmatmul.f32.gmra.mxu0 %v854
        %v888 = vpop.f32.mrf.mxu0
        %v889 = vadd.f32 0.0, %v888
        %890 = vmatmul.f32.gmra.mxu0 %v857
        %v891 = vpop.f32.mrf.mxu0
        %v892 = vadd.f32 0.0, %v891
        %893 = vmatmul.f32.gmra.mxu0 %v860
        %v894 = vpop.f32.mrf.mxu0
        %v895 = vadd.f32 0.0, %v894
        %896 = vmatmul.f32.gmra.mxu0 %v863
        %v897 = vpop.f32.mrf.mxu0
        %v898 = vadd.f32 0.0, %v897
        %899 = vdwg.mxu0
        %900 = vmatpush.msra.mxu0 0.0
        %901 = vmatpush.msra.mxu0 0.0
        %902 = vmatpush.msra.mxu0 0.0
        %903 = vmatpush.msra.mxu0 0.0
        %904 = vmatpush.msra.mxu0 0.0
        %905 = vmatpush.msra.mxu0 0.0
        %906 = vmatpush.msra.mxu0 0.0
        %907 = vmatpush.msra.mxu0 0.0
        %908 = vmatpush.msra.mxu0 0.0
        %909 = vmatpush.msra.mxu0 0.0
        %910 = vmatpush.msra.mxu0 0.0
        %911 = vmatpush.msra.mxu0 0.0
        %912 = vmatpush.msra.mxu0 0.0
        %913 = vmatpush.msra.mxu0 0.0
        %914 = vmatpush.msra.mxu0 0.0
        %915 = vmatpush.msra.mxu0 %v869
        %916 = vmatmul.f32.gmra.mxu0 %v854
        %v917 = vpop.f32.mrf.mxu0
        %v918 = vadd.f32 0.0, %v917
        %919 = vmatmul.f32.gmra.mxu0 %v857
        %v920 = vpop.f32.mrf.mxu0
        %v921 = vadd.f32 0.0, %v920
        %922 = vmatmul.f32.gmra.mxu0 %v860
        %v923 = vpop.f32.mrf.mxu0
        %v924 = vadd.f32 0.0, %v923
        %925 = vmatmul.f32.gmra.mxu0 %v863
        %v926 = vpop.f32.mrf.mxu0
        %v927 = vadd.f32 0.0, %v926
        %928 = vdwg.mxu0
        %v929 = vadd.f32 %v827, %v889
        %v930 = vadd.f32 %v828, %v918
        %v931 = vadd.f32 %v829, %v892
        %v932 = vadd.f32 %v830, %v921
        %v933 = vadd.f32 %v831, %v895
        %v934 = vadd.f32 %v832, %v924
        %v935 = vadd.f32 %v833, %v898
        %v936 = vadd.f32 %v834, %v927
        %s937 = scalar_lea.vmem %s1, 224
        %v938 = vld [vmem:[%s937] sm:$0xff]
        %v939 = vld [vmem:[%s937 + $0x8] sm:$0xff]
        %v940 = vld [vmem:[%s937 + $0x10] sm:$0xff]
        %v941 = vld [vmem:[%s937 + $0x18] sm:$0xff]
        %942 = vrot.lane.b32.xlu0 %v249, 95
        %v943 = vpop.permute.xlu0 %942
        %944 = vrot.lane.b32.xlu0 %v245, 95
        %v945 = vpop.permute.xlu0 %944
        %946 = vrot.lane.b32.xlu0 %v250, 95
        %v947 = vpop.permute.xlu0 %946
        %vm948 = vcmask 777216
        %v949 = vsel %vm948, %v943, %v945
        %v950 = vsel %vm948, %v945, %v947
        %v952 = vsel %vm277, %v938, 0
        %v955 = vsel %vm277, %v939, 0
        %v958 = vsel %vm277, %v940, 0
        %v961 = vsel %vm277, %v941, 0
        %v963 = vsel %vm290, %v949, 0
        %v965 = vsel %vm290, %v950, 0
        %967 = vmatpush.msra.mxu0 0.0
        %968 = vmatpush.msra.mxu0 0.0
        %969 = vmatpush.msra.mxu0 0.0
        %970 = vmatpush.msra.mxu0 0.0
        %971 = vmatpush.msra.mxu0 0.0
        %972 = vmatpush.msra.mxu0 0.0
        %973 = vmatpush.msra.mxu0 0.0
        %974 = vmatpush.msra.mxu0 0.0
        %975 = vmatpush.msra.mxu0 0.0
        %976 = vmatpush.msra.mxu0 0.0
        %977 = vmatpush.msra.mxu0 0.0
        %978 = vmatpush.msra.mxu0 0.0
        %979 = vmatpush.msra.mxu0 0.0
        %980 = vmatpush.msra.mxu0 0.0
        %981 = vmatpush.msra.mxu0 0.0
        %982 = vmatpush.msra.mxu0 %v963
        %983 = vmatmul.f32.gmra.mxu0 %v952
        %v984 = vpop.f32.mrf.mxu0
        %v985 = vadd.f32 0.0, %v984
        %986 = vmatmul.f32.gmra.mxu0 %v955
        %v987 = vpop.f32.mrf.mxu0
        %v988 = vadd.f32 0.0, %v987
        %989 = vmatmul.f32.gmra.mxu0 %v958
        %v990 = vpop.f32.mrf.mxu0
        %v991 = vadd.f32 0.0, %v990
        %992 = vmatmul.f32.gmra.mxu0 %v961
        %v993 = vpop.f32.mrf.mxu0
        %v994 = vadd.f32 0.0, %v993
        %995 = vdwg.mxu0
        %996 = vmatpush.msra.mxu0 0.0
        %997 = vmatpush.msra.mxu0 0.0
        %998 = vmatpush.msra.mxu0 0.0
        %999 = vmatpush.msra.mxu0 0.0
        %1000 = vmatpush.msra.mxu0 0.0
        %1001 = vmatpush.msra.mxu0 0.0
        %1002 = vmatpush.msra.mxu0 0.0
        %1003 = vmatpush.msra.mxu0 0.0
        %1004 = vmatpush.msra.mxu0 0.0
        %1005 = vmatpush.msra.mxu0 0.0
        %1006 = vmatpush.msra.mxu0 0.0
        %1007 = vmatpush.msra.mxu0 0.0
        %1008 = vmatpush.msra.mxu0 0.0
        %1009 = vmatpush.msra.mxu0 0.0
        %1010 = vmatpush.msra.mxu0 0.0
        %1011 = vmatpush.msra.mxu0 %v965
        %1012 = vmatmul.f32.gmra.mxu0 %v952
        %v1013 = vpop.f32.mrf.mxu0
        %v1014 = vadd.f32 0.0, %v1013
        %1015 = vmatmul.f32.gmra.mxu0 %v955
        %v1016 = vpop.f32.mrf.mxu0
        %v1017 = vadd.f32 0.0, %v1016
        %1018 = vmatmul.f32.gmra.mxu0 %v958
        %v1019 = vpop.f32.mrf.mxu0
        %v1020 = vadd.f32 0.0, %v1019
        %1021 = vmatmul.f32.gmra.mxu0 %v961
        %v1022 = vpop.f32.mrf.mxu0
        %v1023 = vadd.f32 0.0, %v1022
        %1024 = vdwg.mxu0
        %v1025 = vadd.f32 %v929, %v985
        %v1026 = vadd.f32 %v930, %v1014
        %v1027 = vadd.f32 %v931, %v988
        %v1028 = vadd.f32 %v932, %v1017
        %v1029 = vadd.f32 %v933, %v991
        %v1030 = vadd.f32 %v934, %v1020
        %v1031 = vadd.f32 %v935, %v994
        %v1032 = vadd.f32 %v936, %v1023
        %1033 = vrot.lane.b32.xlu0 %v249, 94
        %v1034 = vpop.permute.xlu0 %1033
        %1035 = vrot.lane.b32.xlu0 %v245, 94
        %v1036 = vpop.permute.xlu0 %1035
        %1037 = vrot.lane.b32.xlu0 %v250, 94
        %v1038 = vpop.permute.xlu0 %1037
        %vm1039 = vcmask 769024
        %v1040 = vsel %vm1039, %v1034, %v1036
        %v1041 = vsel %vm1039, %v1036, %v1038
        %v1044 = vsel %vm431, %v1040, 0.0
        %v1045 = vsel %vm432, %v1041, 0.0
        %s1046 = scalar_lea.vmem %s1, 256
        %v1047 = vld [vmem:[%s1046] sm:$0xff]
        %v1048 = vld [vmem:[%s1046 + $0x8] sm:$0xff]
        %v1049 = vld [vmem:[%s1046 + $0x10] sm:$0xff]
        %v1050 = vld [vmem:[%s1046 + $0x18] sm:$0xff]
        %v1052 = vsel %vm277, %v1047, 0
        %v1055 = vsel %vm277, %v1048, 0
        %v1058 = vsel %vm277, %v1049, 0
        %v1061 = vsel %vm277, %v1050, 0
        %v1064 = vsel %vm290, %v1044, 0
        %v1067 = vsel %vm290, %v1045, 0
        %1069 = vmatpush.msra.mxu0 0.0
        %1070 = vmatpush.msra.mxu0 0.0
        %1071 = vmatpush.msra.mxu0 0.0
        %1072 = vmatpush.msra.mxu0 0.0
        %1073 = vmatpush.msra.mxu0 0.0
        %1074 = vmatpush.msra.mxu0 0.0
        %1075 = vmatpush.msra.mxu0 0.0
        %1076 = vmatpush.msra.mxu0 0.0
        %1077 = vmatpush.msra.mxu0 0.0
        %1078 = vmatpush.msra.mxu0 0.0
        %1079 = vmatpush.msra.mxu0 0.0
        %1080 = vmatpush.msra.mxu0 0.0
        %1081 = vmatpush.msra.mxu0 0.0
        %1082 = vmatpush.msra.mxu0 0.0
        %1083 = vmatpush.msra.mxu0 0.0
        %1084 = vmatpush.msra.mxu0 %v1064
        %1085 = vmatmul.f32.gmra.mxu0 %v1052
        %v1086 = vpop.f32.mrf.mxu0
        %v1087 = vadd.f32 0.0, %v1086
        %1088 = vmatmul.f32.gmra.mxu0 %v1055
        %v1089 = vpop.f32.mrf.mxu0
        %v1090 = vadd.f32 0.0, %v1089
        %1091 = vmatmul.f32.gmra.mxu0 %v1058
        %v1092 = vpop.f32.mrf.mxu0
        %v1093 = vadd.f32 0.0, %v1092
        %1094 = vmatmul.f32.gmra.mxu0 %v1061
        %v1095 = vpop.f32.mrf.mxu0
        %v1096 = vadd.f32 0.0, %v1095
        %1097 = vdwg.mxu0
        %1098 = vmatpush.msra.mxu0 0.0
        %1099 = vmatpush.msra.mxu0 0.0
        %1100 = vmatpush.msra.mxu0 0.0
        %1101 = vmatpush.msra.mxu0 0.0
        %1102 = vmatpush.msra.mxu0 0.0
        %1103 = vmatpush.msra.mxu0 0.0
        %1104 = vmatpush.msra.mxu0 0.0
        %1105 = vmatpush.msra.mxu0 0.0
        %1106 = vmatpush.msra.mxu0 0.0
        %1107 = vmatpush.msra.mxu0 0.0
        %1108 = vmatpush.msra.mxu0 0.0
        %1109 = vmatpush.msra.mxu0 0.0
        %1110 = vmatpush.msra.mxu0 0.0
        %1111 = vmatpush.msra.mxu0 0.0
        %1112 = vmatpush.msra.mxu0 0.0
        %1113 = vmatpush.msra.mxu0 %v1067
        %1114 = vmatmul.f32.gmra.mxu0 %v1052
        %v1115 = vpop.f32.mrf.mxu0
        %v1116 = vadd.f32 0.0, %v1115
        %1117 = vmatmul.f32.gmra.mxu0 %v1055
        %v1118 = vpop.f32.mrf.mxu0
        %v1119 = vadd.f32 0.0, %v1118
        %1120 = vmatmul.f32.gmra.mxu0 %v1058
        %v1121 = vpop.f32.mrf.mxu0
        %v1122 = vadd.f32 0.0, %v1121
        %1123 = vmatmul.f32.gmra.mxu0 %v1061
        %v1124 = vpop.f32.mrf.mxu0
        %v1125 = vadd.f32 0.0, %v1124
        %1126 = vdwg.mxu0
        %v1127 = vadd.f32 %v1025, %v1087
        %v1128 = vadd.f32 %v1026, %v1116
        %v1129 = vadd.f32 %v1027, %v1090
        %v1130 = vadd.f32 %v1028, %v1119
        %v1131 = vadd.f32 %v1029, %v1093
        %v1132 = vadd.f32 %v1030, %v1122
        %v1133 = vadd.f32 %v1031, %v1096
        %v1134 = vadd.f32 %v1032, %v1125
        %1136 = vset.pattern.permute.xlu0 0
        %1137 = vperm.xlu0 %1136, %v196
        %v1138 = vpop.permute.xlu0 %1137
        %1141 = vset.pattern.permute.xlu0 0
        %1142 = vperm.xlu0 %1141, %v197
        %v1143 = vpop.permute.xlu0 %1142
        %1146 = vset.pattern.permute.xlu0 0
        %1147 = vperm.xlu0 %1146, %v198
        %v1148 = vpop.permute.xlu0 %1147
        %1151 = vset.pattern.permute.xlu0 0
        %1152 = vperm.xlu0 %1151, %v199
        %v1153 = vpop.permute.xlu0 %1152
        %v1155 = vadd.f32 %v1127, %v1138
        %v1156 = vadd.f32 %v1128, %v1138
        %v1157 = vadd.f32 %v1129, %v1143
        %v1158 = vadd.f32 %v1130, %v1143
        %v1159 = vadd.f32 %v1131, %v1148
        %v1160 = vadd.f32 %v1132, %v1148
        %v1161 = vadd.f32 %v1133, %v1153
        %v1162 = vadd.f32 %v1134, %v1153
        %v1163 = vadd.f32 %v1155, %v1156
        %1164 = vadd.xlane.f32.xlu0 %v1163
        %v1165 = vpop.xlane.xlu0 %1164
        %v1166 = vadd.f32 %v1157, %v1158
        %1167 = vadd.xlane.f32.xlu0 %v1166
        %v1168 = vpop.xlane.xlu0 %1167
        %v1169 = vadd.f32 %v1159, %v1160
        %1170 = vadd.xlane.f32.xlu0 %v1169
        %v1171 = vpop.xlane.xlu0 %1170
        %v1172 = vadd.f32 %v1161, %v1162
        %1173 = vadd.xlane.f32.xlu0 %v1172
        %v1174 = vpop.xlane.xlu0 %1173
        %vm1175 = vcmask 261120
        %v1177 = vsel %vm1175, %v200, 0
        %v1180 = vsel %vm1175, %v201, 0
        %v1183 = vsel %vm1175, %v202, 0
        %v1186 = vsel %vm1175, %v203, 0
        %1188 = vmatpush.msra.mxu0 0.0
        %1189 = vmatpush.msra.mxu0 0.0
        %1190 = vmatpush.msra.mxu0 0.0
        %1191 = vmatpush.msra.mxu0 0.0
        %1192 = vmatpush.msra.mxu0 0.0
        %1193 = vmatpush.msra.mxu0 0.0
        %1194 = vmatpush.msra.mxu0 0.0
        %1195 = vmatpush.msra.mxu0 0.0
        %1196 = vmatpush.msra.mxu0 0.0
        %1197 = vmatpush.msra.mxu0 0.0
        %1198 = vmatpush.msra.mxu0 0.0
        %1199 = vmatpush.msra.mxu0 0.0
        %1200 = vmatpush.msra.mxu0 %v1174
        %1201 = vmatpush.msra.mxu0 %v1171
        %1202 = vmatpush.msra.mxu0 %v1168
        %1203 = vmatpush.msra.mxu0 %v1165
        %1204 = vmatmul.f32.gmra.mxu0 %v1177
        %v1205 = vpop.f32.mrf.mxu0
        %v1206 = vadd.f32 0.0, %v1205
        %1207 = vmatmul.f32.gmra.mxu0 %v1180
        %v1208 = vpop.f32.mrf.mxu0
        %v1209 = vadd.f32 0.0, %v1208
        %1210 = vmatmul.f32.gmra.mxu0 %v1183
        %v1211 = vpop.f32.mrf.mxu0
        %v1212 = vadd.f32 0.0, %v1211
        %1213 = vmatmul.f32.gmra.mxu0 %v1186
        %v1214 = vpop.f32.mrf.mxu0
        %v1215 = vadd.f32 0.0, %v1214
        %1216 = vdwg.mxu0
        %1218 = vset.pattern.permute.xlu0 0
        %1219 = vperm.xlu0 %1218, %v1206
        %v1220 = vpop.permute.xlu0 %1219
        %1223 = vset.pattern.permute.xlu0 0
        %1224 = vperm.xlu0 %1223, %v1209
        %v1225 = vpop.permute.xlu0 %1224
        %1228 = vset.pattern.permute.xlu0 0
        %1229 = vperm.xlu0 %1228, %v1212
        %v1230 = vpop.permute.xlu0 %1229
        %1233 = vset.pattern.permute.xlu0 0
        %1234 = vperm.xlu0 %1233, %v1215
        %v1235 = vpop.permute.xlu0 %1234
        %v1237 = vsub.f32 %v1155, %v1220
        %v1238 = vsub.f32 %v1156, %v1220
        %v1239 = vsub.f32 %v1157, %v1225
        %v1240 = vsub.f32 %v1158, %v1225
        %v1241 = vsub.f32 %v1159, %v1230
        %v1242 = vsub.f32 %v1160, %v1230
        %v1243 = vsub.f32 %v1161, %v1235
        %v1244 = vsub.f32 %v1162, %v1235
        %v1245 = vmul.f32 %v1237, %v1237
        %v1246 = vmul.f32 %v1238, %v1238
        %v1247 = vmul.f32 %v1239, %v1239
        %v1248 = vmul.f32 %v1240, %v1240
        %v1249 = vmul.f32 %v1241, %v1241
        %v1250 = vmul.f32 %v1242, %v1242
        %v1251 = vmul.f32 %v1243, %v1243
        %v1252 = vmul.f32 %v1244, %v1244
        %v1253 = vadd.f32 %v1245, %v1246
        %1254 = vadd.xlane.f32.xlu0 %v1253
        %v1255 = vpop.xlane.xlu0 %1254
        %v1256 = vadd.f32 %v1247, %v1248
        %1257 = vadd.xlane.f32.xlu0 %v1256
        %v1258 = vpop.xlane.xlu0 %1257
        %v1259 = vadd.f32 %v1249, %v1250
        %1260 = vadd.xlane.f32.xlu0 %v1259
        %v1261 = vpop.xlane.xlu0 %1260
        %v1262 = vadd.f32 %v1251, %v1252
        %1263 = vadd.xlane.f32.xlu0 %v1262
        %v1264 = vpop.xlane.xlu0 %1263
        %1265 = vmatpush.msra.mxu0 0.0
        %1266 = vmatpush.msra.mxu0 0.0
        %1267 = vmatpush.msra.mxu0 0.0
        %1268 = vmatpush.msra.mxu0 0.0
        %1269 = vmatpush.msra.mxu0 0.0
        %1270 = vmatpush.msra.mxu0 0.0
        %1271 = vmatpush.msra.mxu0 0.0
        %1272 = vmatpush.msra.mxu0 0.0
        %1273 = vmatpush.msra.mxu0 0.0
        %1274 = vmatpush.msra.mxu0 0.0
        %1275 = vmatpush.msra.mxu0 0.0
        %1276 = vmatpush.msra.mxu0 0.0
        %1277 = vmatpush.msra.mxu0 %v1264
        %1278 = vmatpush.msra.mxu0 %v1261
        %1279 = vmatpush.msra.mxu0 %v1258
        %1280 = vmatpush.msra.mxu0 %v1255
        %1281 = vmatmul.f32.gmra.mxu0 %v1177
        %v1282 = vpop.f32.mrf.mxu0
        %v1283 = vadd.f32 1e-05, %v1282
        %1284 = vmatmul.f32.gmra.mxu0 %v1180
        %v1285 = vpop.f32.mrf.mxu0
        %v1286 = vadd.f32 1e-05, %v1285
        %1287 = vmatmul.f32.gmra.mxu0 %v1183
        %v1288 = vpop.f32.mrf.mxu0
        %v1289 = vadd.f32 1e-05, %v1288
        %1290 = vmatmul.f32.gmra.mxu0 %v1186
        %v1291 = vpop.f32.mrf.mxu0
        %v1292 = vadd.f32 1e-05, %v1291
        %1293 = vdwg.mxu0
        %v1294 = vrsqrt.pop %v1283
        %v1295 = vmul.f32 %v1294, %v1283
        %v1296 = vmul.f32 %v1295, %v1294
        %v1297 = vmul.f32 0.5, %v1296
        %v1298 = vsub.f32 1.5, %v1297
        %v1299 = vmul.f32 %v1294, %v1298
        %vm1300 = vweird.f32 %v1283
        %vm1301 = vweird.f32 %v1294
        %vm1302 = vmor %vm1300, %vm1301
        %v1303 = vsel %vm1302, %v1294, %v1299
        %v1304 = vrsqrt.pop %v1286
        %v1305 = vmul.f32 %v1304, %v1286
        %v1306 = vmul.f32 %v1305, %v1304
        %v1307 = vmul.f32 0.5, %v1306
        %v1308 = vsub.f32 1.5, %v1307
        %v1309 = vmul.f32 %v1304, %v1308
        %vm1310 = vweird.f32 %v1286
        %vm1311 = vweird.f32 %v1304
        %vm1312 = vmor %vm1310, %vm1311
        %v1313 = vsel %vm1312, %v1304, %v1309
        %v1314 = vrsqrt.pop %v1289
        %v1315 = vmul.f32 %v1314, %v1289
        %v1316 = vmul.f32 %v1315, %v1314
        %v1317 = vmul.f32 0.5, %v1316
        %v1318 = vsub.f32 1.5, %v1317
        %v1319 = vmul.f32 %v1314, %v1318
        %vm1320 = vweird.f32 %v1289
        %vm1321 = vweird.f32 %v1314
        %vm1322 = vmor %vm1320, %vm1321
        %v1323 = vsel %vm1322, %v1314, %v1319
        %v1324 = vrsqrt.pop %v1292
        %v1325 = vmul.f32 %v1324, %v1292
        %v1326 = vmul.f32 %v1325, %v1324
        %v1327 = vmul.f32 0.5, %v1326
        %v1328 = vsub.f32 1.5, %v1327
        %v1329 = vmul.f32 %v1324, %v1328
        %vm1330 = vweird.f32 %v1292
        %vm1331 = vweird.f32 %v1324
        %vm1332 = vmor %vm1330, %vm1331
        %v1333 = vsel %vm1332, %v1324, %v1329
        %1334 = vrot.lane.b32.xlu0 %v196, 127
        %v1335 = vpop.permute.xlu0 %1334
        %1336 = vrot.lane.b32.xlu0 %v197, 127
        %v1337 = vpop.permute.xlu0 %1336
        %1338 = vrot.lane.b32.xlu0 %v198, 127
        %v1339 = vpop.permute.xlu0 %1338
        %1340 = vrot.lane.b32.xlu0 %v199, 127
        %v1341 = vpop.permute.xlu0 %1340
        %v1346 = vmul.f32 %v1303, %v1335
        %v1347 = vmul.f32 %v1313, %v1337
        %v1348 = vmul.f32 %v1323, %v1339
        %v1349 = vmul.f32 %v1333, %v1341
        %1351 = vset.pattern.permute.xlu0 0
        %1352 = vperm.xlu0 %1351, %v1346
        %v1353 = vpop.permute.xlu0 %1352
        %1356 = vset.pattern.permute.xlu0 0
        %1357 = vperm.xlu0 %1356, %v1347
        %v1358 = vpop.permute.xlu0 %1357
        %1361 = vset.pattern.permute.xlu0 0
        %1362 = vperm.xlu0 %1361, %v1348
        %v1363 = vpop.permute.xlu0 %1362
        %1366 = vset.pattern.permute.xlu0 0
        %1367 = vperm.xlu0 %1366, %v1349
        %v1368 = vpop.permute.xlu0 %1367
        %v1370 = vmul.f32 %v1237, %v1353
        %v1371 = vmul.f32 %v1238, %v1353
        %v1372 = vmul.f32 %v1239, %v1358
        %v1373 = vmul.f32 %v1240, %v1358
        %v1374 = vmul.f32 %v1241, %v1363
        %v1375 = vmul.f32 %v1242, %v1363
        %v1376 = vmul.f32 %v1243, %v1368
        %v1377 = vmul.f32 %v1244, %v1368
        %1378 = vset.pattern.permute.xlu0 2
        %1379 = vperm.xlu0 %1378, %v196
        %v1380 = vpop.permute.xlu0 %1379
        %1382 = vset.pattern.permute.xlu0 2
        %1383 = vperm.xlu0 %1382, %v197
        %v1384 = vpop.permute.xlu0 %1383
        %1386 = vset.pattern.permute.xlu0 2
        %1387 = vperm.xlu0 %1386, %v198
        %v1388 = vpop.permute.xlu0 %1387
        %1390 = vset.pattern.permute.xlu0 2
        %1391 = vperm.xlu0 %1390, %v199
        %v1392 = vpop.permute.xlu0 %1391
        %v1394 = vadd.f32 %v1370, %v1380
        %v1395 = vadd.f32 %v1371, %v1380
        %v1396 = vadd.f32 %v1372, %v1384
        %v1397 = vadd.f32 %v1373, %v1384
        %v1398 = vadd.f32 %v1374, %v1388
        %v1399 = vadd.f32 %v1375, %v1388
        %v1400 = vadd.f32 %v1376, %v1392
        %v1401 = vadd.f32 %v1377, %v1392
        %v1402 = vmin.f32 %v1394, 20.0
        %v1403 = vmin.f32 %v1395, 20.0
        %v1404 = vmin.f32 %v1396, 20.0
        %v1405 = vmin.f32 %v1397, 20.0
        %v1406 = vmin.f32 %v1398, 20.0
        %v1407 = vmin.f32 %v1399, 20.0
        %v1408 = vmin.f32 %v1400, 20.0
        %v1409 = vmin.f32 %v1401, 20.0
        %v1410 = vmul.f32 %v1402, 1.442695
        %v1411 = vpow.pop %v1410
        %v1412 = vmul.f32 %v1403, 1.442695
        %v1413 = vpow.pop %v1412
        %v1414 = vmul.f32 %v1404, 1.442695
        %v1415 = vpow.pop %v1414
        %v1416 = vmul.f32 %v1405, 1.442695
        %v1417 = vpow.pop %v1416
        %v1418 = vmul.f32 %v1406, 1.442695
        %v1419 = vpow.pop %v1418
        %v1420 = vmul.f32 %v1407, 1.442695
        %v1421 = vpow.pop %v1420
        %v1422 = vmul.f32 %v1408, 1.442695
        %v1423 = vpow.pop %v1422
        %v1424 = vmul.f32 %v1409, 1.442695
        %v1425 = vpow.pop %v1424
        %v1426 = vadd.f32 %v1411, 2.0
        %v1427 = vadd.f32 %v1413, 2.0
        %v1428 = vadd.f32 %v1415, 2.0
        %v1429 = vadd.f32 %v1417, 2.0
        %v1430 = vadd.f32 %v1419, 2.0
        %v1431 = vadd.f32 %v1421, 2.0
        %v1432 = vadd.f32 %v1423, 2.0
        %v1433 = vadd.f32 %v1425, 2.0
        %v1434 = vmul.f32 %v1411, %v1426
        %v1435 = vmul.f32 %v1413, %v1427
        %v1436 = vmul.f32 %v1415, %v1428
        %v1437 = vmul.f32 %v1417, %v1429
        %v1438 = vmul.f32 %v1419, %v1430
        %v1439 = vmul.f32 %v1421, %v1431
        %v1440 = vmul.f32 %v1423, %v1432
        %v1441 = vmul.f32 %v1425, %v1433
        %v1442 = vmul.f32 %v1394, %v1434
        %v1443 = vmul.f32 %v1395, %v1435
        %v1444 = vmul.f32 %v1396, %v1436
        %v1445 = vmul.f32 %v1397, %v1437
        %v1446 = vmul.f32 %v1398, %v1438
        %v1447 = vmul.f32 %v1399, %v1439
        %v1448 = vmul.f32 %v1400, %v1440
        %v1449 = vmul.f32 %v1401, %v1441
        %v1450 = vadd.f32 %v1434, 2.0
        %v1451 = vadd.f32 %v1435, 2.0
        %v1452 = vadd.f32 %v1436, 2.0
        %v1453 = vadd.f32 %v1437, 2.0
        %v1454 = vadd.f32 %v1438, 2.0
        %v1455 = vadd.f32 %v1439, 2.0
        %v1456 = vadd.f32 %v1440, 2.0
        %v1457 = vadd.f32 %v1441, 2.0
        %v1458 = vrcp.pop %v1450
        %v1459 = vrcp.pop %v1451
        %v1460 = vrcp.pop %v1452
        %v1461 = vrcp.pop %v1453
        %v1462 = vrcp.pop %v1454
        %v1463 = vrcp.pop %v1455
        %v1464 = vrcp.pop %v1456
        %v1465 = vrcp.pop %v1457
        %v1466 = vmul.f32 %v1442, %v1458
        %v1467 = vmul.f32 %v1443, %v1459
        %v1468 = vmul.f32 %v1444, %v1460
        %v1469 = vmul.f32 %v1445, %v1461
        %v1470 = vmul.f32 %v1446, %v1462
        %v1471 = vmul.f32 %v1447, %v1463
        %v1472 = vmul.f32 %v1448, %v1464
        %v1473 = vmul.f32 %v1449, %v1465
        %vm1474 = vcmp.gt.f32.partialorder %v1394, 20.0
        %vm1475 = vcmp.gt.f32.partialorder %v1395, 20.0
        %vm1476 = vcmp.gt.f32.partialorder %v1396, 20.0
        %vm1477 = vcmp.gt.f32.partialorder %v1397, 20.0
        %vm1478 = vcmp.gt.f32.partialorder %v1398, 20.0
        %vm1479 = vcmp.gt.f32.partialorder %v1399, 20.0
        %vm1480 = vcmp.gt.f32.partialorder %v1400, 20.0
        %vm1481 = vcmp.gt.f32.partialorder %v1401, 20.0
        %v1482 = vsel %vm1474, %v1394, %v1466
        %v1483 = vsel %vm1475, %v1395, %v1467
        %v1484 = vsel %vm1476, %v1396, %v1468
        %v1485 = vsel %vm1477, %v1397, %v1469
        %v1486 = vsel %vm1478, %v1398, %v1470
        %v1487 = vsel %vm1479, %v1399, %v1471
        %v1488 = vsel %vm1480, %v1400, %v1472
        %v1489 = vsel %vm1481, %v1401, %v1473
        %1490 = vst [vmem:[%s190] sm:$0xff] %v1482
        %1491 = vst [vmem:[%s190 + $0x8] sm:$0xff] %v1483
        %1492 = vst [vmem:[%s190 + $0x10] sm:$0xff] %v1484
        %1493 = vst [vmem:[%s190 + $0x18] sm:$0xff] %v1485
        %1494 = vst [vmem:[%s190 + $0x20] sm:$0xff] %v1486
        %1495 = vst [vmem:[%s190 + $0x28] sm:$0xff] %v1487
        %1496 = vst [vmem:[%s190 + $0x30] sm:$0xff] %v1488
        %1497 = vst [vmem:[%s190 + $0x38] sm:$0xff] %v1489
        %s1498 = sand.u32 %s115, 1
        %s1499 = scalar_lea.sflag [#allocation3], %s1498
        %s1500 = sand.u32 %s115, 1
        %s1501 = smul.addr %s1500, 64
        %s1502 = scalar_lea.vmem [#allocation2], %s1501
        // Predicated region
        $region37: #{tpu_custom_call.1} parent=35 // pred_check
          %p1503 = pneg %p125
        $region38: #{tpu_custom_call.1} parent=35 // pred_check_branch
          %1505 = sbr.rel (%p1503) target = $region40
        $region39: #{tpu_custom_call.1} parent=35 // pred_region
          %1507 = vsyncadd %s1499, 0
          %s1508 = smul.addr %s18, 8
          %s1509 = smul.addr %s1508, 8
          %s1510 = scalar_lea.hbm %s4, %s1509
          %s1511 = sshll.u32 %s1502, 4
          %s1512 = int_to_ptr.vmem [resolvable:$true] %s1511
          %s1513 = sshll.u32 %s1510, 4
          %s1514 = int_to_ptr.hbm [resolvable:$true] %s1513
          %1519 = dma.vmem_to_hbm [thread:$0]  %s1512, 1024, %s1514, %s1499, 256, 256, 16
        $region40: #{tpu_custom_call.1} parent=35 // pred_fallthru
          _
      $region36: #{tpu_custom_call.1} parent=5 // pred_fallthru
        _
      %p1520 = scmp.le.s32.totalorder 2, %s13
      // Predicated region
      $region41: #{tpu_custom_call.1} parent=5 // pred_check
        %p1521 = pneg %p1520
      $region42: #{tpu_custom_call.1} parent=5 // pred_check_branch
        %1523 = sbr.rel (%p1521) target = $region44
      $region43: #{tpu_custom_call.1} parent=5 // pred_region
        %s1524 = ssub.s32 %s13, 2
        // Predicated region
        $region45: #{tpu_custom_call.1} parent=43 // pred_check
          %p1525 = pneg %p131
        $region46: #{tpu_custom_call.1} parent=43 // pred_check_branch
          %1527 = sbr.rel (%p1525) target = $region48
        $region47: #{tpu_custom_call.1} parent=43 // pred_region
          %s1528 = sand.u32 %s116, 1
          %s1529 = scalar_lea.sflag [#allocation3], %s1528
          %s1530 = sand.u32 %s116, 1
          %s1531 = smul.addr %s1530, 64
          %s1532 = scalar_lea.vmem [#allocation2], %s1531
          %1534 = dma.done %s1529, 1024
        $region48: #{tpu_custom_call.1} parent=43 // pred_fallthru
          _
      $region44: #{tpu_custom_call.1} parent=5 // pred_fallthru
        _
    $region6: #{tpu_custom_call.1} parent=1 // loop_footer
      %s17 = sadd.s32 1, %s13
    $region7: #{tpu_custom_call.1} parent=1 // loop_footer_branch
      %12 = sbr.rel target = $region3
    $region8: #{tpu_custom_call.1} parent=1 // loop_exit
      _
    %1535 = vsyncpa [#allocation3], 1
    %s1536 = scalar_lea.sflag [#allocation3], 1
    %1537 = vsyncpa %s1536, 1

</llo_original>
